<compile_context>
chip_gen: v7x
topology: tpu7x:2x2x1
jax: 0.10.0
libtpu: 0.0.40
codegen_flags: <defaults>
</compile_context>

<pallas_src>
import numpy as np
import jax
import jax.numpy as jnp
from jax.experimental import pallas as pl
from jax.experimental.pallas import tpu as pltpu

BN_EPS = 1e-5
_MAX_TILE = 65536  # review: 32768-65536 pixel-tile cap


# ---------------------------------------------------------------------------
# Deterministic parameter construction (mirrors SeqBottle.__init__)
# ---------------------------------------------------------------------------
def _orthogonal(rng, rows, cols):
    """numpy replica of torch.nn.init.orthogonal_ for a (rows, cols) matrix."""
    a = rng.standard_normal((rows, cols))
    transposed = rows < cols
    if transposed:
        a = a.T
    q, r = np.linalg.qr(a)
    q = q * np.sign(np.diag(r))
    if transposed:
        q = q.T
    return q.astype(np.float32)


def _init_weight(rng, in_channel, mid_channel):
    assert mid_channel >= in_channel
    W = _orthogonal(rng, mid_channel, in_channel)              # (mid, in)
    return np.concatenate([W, -W], axis=0).astype(np.float32)  # (2*mid, in)


def make_seqbottle_params(in_channel, out_channel, seed=0):
    rng = np.random.default_rng(seed)
    w1 = _init_weight(rng, in_channel, in_channel)              # (2C, C)  conv1 center tap
    w2 = _init_weight(rng, in_channel, in_channel * 2)          # (4C, C)  conv2
    w = rng.standard_normal((out_channel, in_channel * 4)).astype(np.float32)
    w[:in_channel] = w2.T / np.sqrt(2.0)
    for k in range(in_channel, out_channel):
        r = w[k] - w[:k].T @ (w[:k] @ w[k])
        w[k] = r / np.linalg.norm(r)
    w3 = (w / np.sqrt(2.0)).astype(np.float32)                  # (Cout, 4C) conv3
    return jnp.asarray(w1), jnp.asarray(w2), jnp.asarray(w3)


# ---------------------------------------------------------------------------
# Pallas kernels (all operate on channels-first (channels, pixel_tile) blocks)
# ---------------------------------------------------------------------------
def _stats1_kernel(x_ref, w1_ref, w1t_ref, sum_ref, sq_ref):
    """Accumulate per-(batch, channel) sum / sum-of-squares of h2 (bn1 stats)."""
    x = x_ref[...]                                                          # (C, T)
    h1 = jnp.maximum(jnp.dot(w1_ref[...], x,
                             preferred_element_type=jnp.float32), 0.0)      # (2C, T)
    h2 = jnp.dot(w1t_ref[...], h1, preferred_element_type=jnp.float32)      # (C, T)

    @pl.when(pl.program_id(1) == 0)                 # fresh accumulator per batch index
    def _():
        sum_ref[...] = jnp.zeros_like(sum_ref)
        sq_ref[...] = jnp.zeros_like(sq_ref)

    # cross-lane reduce via MXU (ones-column matmul) -> keep the 2 XLUs free
    ones = jnp.ones((h2.shape[1], 1), dtype=jnp.float32)
    sum_ref[...] += jnp.dot(h2, ones, preferred_element_type=jnp.float32)   # (C, 1)
    sq_ref[...] += jnp.dot(h2 * h2, ones, preferred_element_type=jnp.float32)


def _stats2_kernel(x_ref, w1_ref, w1t_ref, w2s_ref, b2_ref, w3_ref, sum_ref, sq_ref):
    """Recompute chain up to h4 (bn1 already folded into conv2); accumulate bn2 stats."""
    x = x_ref[...]                                                          # (C, T)
    h1 = jnp.maximum(jnp.dot(w1_ref[...], x,
                             preferred_element_type=jnp.float32), 0.0)      # (2C, T)
    h2 = jnp.dot(w1t_ref[...], h1, preferred_element_type=jnp.float32)      # (C, T)
    h3 = jnp.maximum(jnp.dot(w2s_ref[...], h2,
                             preferred_element_type=jnp.float32)
                     + b2_ref[...], 0.0)                                    # (4C, T)
    h4 = jnp.dot(w3_ref[...], h3, preferred_element_type=jnp.float32)       # (Cout, T)

    @pl.when(pl.program_id(1) == 0)                 # fresh accumulator per batch index
    def _():
        sum_ref[...] = jnp.zeros_like(sum_ref)
        sq_ref[...] = jnp.zeros_like(sq_ref)

    ones = jnp.ones((h4.shape[1], 1), dtype=jnp.float32)
    sum_ref[...] += jnp.dot(h4, ones, preferred_element_type=jnp.float32)   # (Cout, 1)
    sq_ref[...] += jnp.dot(h4 * h4, ones, preferred_element_type=jnp.float32)


def _final_kernel(x_ref, w1_ref, w1t_ref, w2s_ref, b2_ref, w3s_ref, b3_ref, o_ref):
    """Full chain with bn1 folded into conv2 and bn2 folded into conv3."""
    x = x_ref[...]                                                          # (C, T)
    h1 = jnp.maximum(jnp.dot(w1_ref[...], x,
                             preferred_element_type=jnp.float32), 0.0)      # (2C, T)
    h2 = jnp.dot(w1t_ref[...], h1, preferred_element_type=jnp.float32)      # (C, T)
    h3 = jnp.maximum(jnp.dot(w2s_ref[...], h2,
                             preferred_element_type=jnp.float32)
                     + b2_ref[...], 0.0)                                    # (4C, T)
    o_ref[...] = (jnp.dot(w3s_ref[...], h3,
                          preferred_element_type=jnp.float32)
                  + b3_ref[...])                                            # (Cout, T)


# ---------------------------------------------------------------------------
# Wrapper
# ---------------------------------------------------------------------------
def _vmem_info():
    """(physical VMEM bytes, vmem_limit_bytes to request). v7x-safe fallback."""
    try:
        phys = int(pltpu.get_tpu_info().vmem_capacity_bytes)
    except Exception:
        phys = 64 * 1024 * 1024          # conservative (v7x has 64 MiB/TC)
    limit = (phys * 3) // 4              # leave compiler scratch headroom
    return phys, limit


def _pick_tile(hw, c_in, c_out, vmem_budget_bytes):
    """Largest multiple of 128 dividing hw that fits the VMEM budget (<= 65536)."""
    # f32 bytes per tile-pixel kept live in VMEM:
    #   2*C double-buffered x input, 2*Cout double-buffered output (pass 3),
    #   h1 (2C) + h2 (C) + h3 (4C) + h4 (Cout) intermediates
    per_pixel = 4 * (2 * c_in + 2 * c_out + 2 * c_in + c_in + 4 * c_in + c_out)
    cap = min(_MAX_TILE, max(128, (vmem_budget_bytes // per_pixel) // 128 * 128))
    best = None
    t = 128
    while t <= min(cap, hw):
        if hw % t == 0:
            best = t
        t += 128
    if best is None:
        # TODO(synk): HW has no multiple-of-128 divisor (or HW < 128). Falling
        # back to a single full-HW block is correct but lane-sparse (masked
        # partial stores) -- known perf cliff for awkward image sizes.
        best = hw
    return best


def seqbottle_forward(x_nchw, w1, w2, w3):
    """x_nchw: (N, C, H, W) float32  ->  (N, Cout, H, W) float32."""
    N, C, H, W = x_nchw.shape
    Cout, C4 = w3.shape
    assert C4 == 4 * C and w1.shape == (2 * C, C) and w2.shape == (4 * C, C)
    HW = H * W
    P = N * HW

    _, vmem_limit = _vmem_info()
    tile = _pick_tile(HW, C, Cout, vmem_limit // 2)
    grid = (N, HW // tile)

    # NCHW -> (N, C, H*W) is a free reshape (no transpose); batch is a grid axis.
    x3 = x_nchw.reshape(N, C, HW).astype(jnp.float32)
    w1t = jnp.transpose(w1)                           # (C, 2C) pre-transposed on host

    x_spec = pl.BlockSpec((None, C, tile), lambda n, t: (n, 0, t))

    def full_spec(shape):
        return pl.BlockSpec(shape, lambda n, t: (0,) * len(shape))

    def stat_spec(ch):
        # per-batch accumulator block -> safe to mark the batch axis "parallel"
        return pl.BlockSpec((None, ch, 1), lambda n, t: (n, 0, 0))

    stats_cp = pltpu.CompilerParams(
        dimension_semantics=("parallel", "arbitrary"),
        vmem_limit_bytes=vmem_limit)
    final_cp = pltpu.CompilerParams(
        dimension_semantics=("parallel", "parallel"),
        vmem_limit_bytes=vmem_limit)

    # per-pixel flop counts for the cost estimates
    f1 = 2 * C * (2 * C)          # conv1
    f1t = 2 * (2 * C) * C         # center-tap transposed conv
    f2 = 2 * C * (4 * C)          # conv2
    f3 = 2 * (4 * C) * Cout       # conv3
    fs1 = 2 * 2 * C               # stats reduction matmuls (bn1)
    fs2 = 2 * 2 * Cout            # stats reduction matmuls (bn2)
    w_bytes = 4 * (2 * w1.size + w2.size + w3.size + 4 * C + Cout)

    # ---- pass 1: bn1 batch statistics of h2 --------------------------------
    s1p, q1p = pl.pallas_call(
        _stats1_kernel,
        grid=grid,
        in_specs=[x_spec, full_spec(w1.shape), full_spec(w1t.shape)],
        out_specs=[stat_spec(C), stat_spec(C)],
        out_shape=[jax.ShapeDtypeStruct((N, C, 1), jnp.float32),
                   jax.ShapeDtypeStruct((N, C, 1), jnp.float32)],
        compiler_params=stats_cp,
        cost_estimate=pl.CostEstimate(
            flops=P * (f1 + f1t + fs1), transcendentals=0,
            bytes_accessed=4 * (P * C + 2 * N * C) + w_bytes),
    )(x3, w1, w1t)

    s1 = jnp.sum(s1p, axis=0)                         # (C, 1)  reduce megacore partials
    q1 = jnp.sum(q1p, axis=0)
    m1 = s1[:, 0] / P
    v1 = q1[:, 0] / P - m1 * m1
    inv1 = jax.lax.rsqrt(v1 + BN_EPS)
    # fold bn1 (gamma=1, beta=0, batch stats) into conv2: w2s @ h2 + b2
    w2s = w2 * inv1[None, :]                          # (4C, C)
    b2 = -(w2s @ m1)[:, None]                         # (4C, 1)

    # ---- pass 2: bn2 batch statistics of h4 --------------------------------
    s2p, q2p = pl.pallas_call(
        _stats2_kernel,
        grid=grid,
        in_specs=[x_spec, full_spec(w1.shape), full_spec(w1t.shape),
                  full_spec(w2s.shape), full_spec(b2.shape), full_spec(w3.shape)],
        out_specs=[stat_spec(Cout), stat_spec(Cout)],
        out_shape=[jax.ShapeDtypeStruct((N, Cout, 1), jnp.float32),
                   jax.ShapeDtypeStruct((N, Cout, 1), jnp.float32)],
        compiler_params=stats_cp,
        cost_estimate=pl.CostEstimate(
            flops=P * (f1 + f1t + f2 + f3 + fs2), transcendentals=0,
            bytes_accessed=4 * (P * C + 2 * N * Cout) + w_bytes),
    )(x3, w1, w1t, w2s, b2, w3)

    s2 = jnp.sum(s2p, axis=0)                         # (Cout, 1)
    q2 = jnp.sum(q2p, axis=0)
    m2 = s2[:, 0] / P
    v2 = q2[:, 0] / P - m2 * m2
    inv2 = jax.lax.rsqrt(v2 + BN_EPS)
    # fold bn2 into conv3: (w3 @ h3 - m2) * inv2 = w3s @ h3 + b3
    w3s = w3 * inv2[:, None]                          # (Cout, 4C)
    b3 = (-m2 * inv2)[:, None]                        # (Cout, 1)

    # ---- pass 3: full chain, lane-dense (Cout, tile) output blocks ---------
    out3 = pl.pallas_call(
        _final_kernel,
        grid=grid,
        in_specs=[x_spec, full_spec(w1.shape), full_spec(w1t.shape),
                  full_spec(w2s.shape), full_spec(b2.shape),
                  full_spec(w3s.shape), full_spec(b3.shape)],
        out_specs=pl.BlockSpec((None, Cout, tile), lambda n, t: (n, 0, t)),
        out_shape=jax.ShapeDtypeStruct((N, Cout, HW), jnp.float32),
        compiler_params=final_cp,
        cost_estimate=pl.CostEstimate(
            flops=P * (f1 + f1t + f2 + f3), transcendentals=0,
            bytes_accessed=4 * P * (C + Cout) + w_bytes),
    )(x3, w1, w1t, w2s, b2, w3s, b3)

    return out3.reshape(N, Cout, H, W)


# ---------------------------------------------------------------------------
# Plain-JAX reference (same semantics) for a sanity check
# ---------------------------------------------------------------------------
def seqbottle_reference(x_nchw, w1, w2, w3):
    N, C, H, W = x_nchw.shape
    x = jnp.transpose(x_nchw, (0, 2, 3, 1)).reshape(-1, C).astype(jnp.float32)
    h1 = jnp.maximum(x @ w1.T, 0.0)
    h2 = h1 @ w1
    h2 = (h2 - h2.mean(0)) / jnp.sqrt(h2.var(0) + BN_EPS)
    h3 = jnp.maximum(h2 @ w2.T, 0.0)
    h4 = h3 @ w3.T
    h4 = (h4 - h4.mean(0)) / jnp.sqrt(h4.var(0) + BN_EPS)
    Cout = w3.shape[0]
    return jnp.transpose(h4.reshape(N, H, W, Cout), (0, 3, 1, 2))


if __name__ == "__main__":
    in_channel, out_channel = 4, 8
    N, H, W = 2, 16, 16

    w1, w2, w3 = make_seqbottle_params(in_channel, out_channel, seed=0)

    key = jax.random.PRNGKey(0)
    x = jax.random.normal(key, (N, in_channel, H, W), dtype=jnp.float32)

    fwd = jax.jit(seqbottle_forward)
    out = jax.block_until_ready(fwd(x, w1, w2, w3))

    ref = jax.block_until_ready(seqbottle_reference(x, w1, w2, w3))
    np.testing.assert_allclose(np.asarray(out), np.asarray(ref), rtol=2e-3, atol=2e-3)
    assert out.shape == (N, out_channel, H, W)

    print("KERNEL_OK")
</pallas_src>

<mosaic_0001>
module attributes {stable_mosaic.version = 11 : i64} {
  func.func @_stats1_kernel(%arg0: i32, %arg1: i32, %arg2: memref<1x4x256xf32, #tpu.memory_space<vmem>>, %arg3: memref<8x4xf32, #tpu.memory_space<vmem>>, %arg4: memref<4x8xf32, #tpu.memory_space<vmem>>, %arg5: memref<1x4x1xf32, #tpu.memory_space<vmem>>, %arg6: memref<1x4x1xf32, #tpu.memory_space<vmem>>) attributes {dimension_semantics = [#tpu.dimension_semantics<parallel>, #tpu.dimension_semantics<arbitrary>], iteration_bounds = array<i64: 2, 1>, scalar_prefetch = 0 : i64, scratch_operands = 0 : i64, tpu.core_type = #tpu.core_type<tc>, window_params = [{transform_indices = @transform_0, window_bounds = array<i64: 1, 4, 256>}, {pipeline_mode = #tpu.pipeline_mode<synchronous>, transform_indices = @transform_1, window_bounds = array<i64: 8, 4>}, {pipeline_mode = #tpu.pipeline_mode<synchronous>, transform_indices = @transform_2, window_bounds = array<i64: 4, 8>}, {transform_indices = @transform_3, window_bounds = array<i64: 1, 4, 1>}, {transform_indices = @transform_4, window_bounds = array<i64: 1, 4, 1>}]} {
    %c0 = arith.constant 0 : index
    %c0_0 = arith.constant 0 : index
    %c0_1 = arith.constant 0 : index
    %0 = vector.load %arg2[%c0, %c0_0, %c0_1] : memref<1x4x256xf32, #tpu.memory_space<vmem>>, vector<1x4x256xf32>
    %1 = vector.shape_cast %0 : vector<1x4x256xf32> to vector<4x256xf32>
    %c0_2 = arith.constant 0 : index
    %c0_3 = arith.constant 0 : index
    %2 = vector.load %arg3[%c0_2, %c0_3] : memref<8x4xf32, #tpu.memory_space<vmem>>, vector<8x4xf32>
    %cst = arith.constant dense<0.000000e+00> : vector<8x256xf32>
    %3 = tpu.matmul %2, %1, %cst {dimension_numbers = #tpu.dot_dimension_numbers<[1], [0], [0], [1], [0, 0, 1, 1], [], []>} : vector<8x4xf32>, vector<4x256xf32>, vector<8x256xf32> -> vector<8x256xf32>
    %cst_4 = arith.constant 0.000000e+00 : f32
    %4 = vector.broadcast %cst_4 : f32 to vector<8x256xf32>
    %5 = arith.maximumf %3, %4 : vector<8x256xf32>
    %c0_5 = arith.constant 0 : index
    %c0_6 = arith.constant 0 : index
    %6 = vector.load %arg4[%c0_5, %c0_6] : memref<4x8xf32, #tpu.memory_space<vmem>>, vector<4x8xf32>
    %cst_7 = arith.constant dense<0.000000e+00> : vector<4x256xf32>
    %7 = tpu.matmul %6, %5, %cst_7 {dimension_numbers = #tpu.dot_dimension_numbers<[1], [0], [0], [1], [0, 0, 1, 1], [], []>} : vector<4x8xf32>, vector<8x256xf32>, vector<4x256xf32> -> vector<4x256xf32>
    %c0_i32 = arith.constant 0 : i32
    %8 = arith.cmpi eq, %arg1, %c0_i32 : i32
    %9 = arith.extui %8 : i1 to i32
    %c0_i32_8 = arith.constant 0 : i32
    %10 = arith.cmpi ne, %9, %c0_i32_8 : i32
    scf.if %10 {
      %cst_24 = arith.constant 0.000000e+00 : f32
      %27 = vector.broadcast %cst_24 : f32 to vector<4x1xf32>
      %c0_25 = arith.constant 0 : index
      %c0_26 = arith.constant 0 : index
      %c0_27 = arith.constant 0 : index
      %28 = vector.load %arg5[%c0_25, %c0_26, %c0_27] : memref<1x4x1xf32, #tpu.memory_space<vmem>>, vector<1x4x1xf32>
      %29 = vector.shape_cast %28 : vector<1x4x1xf32> to vector<4x1xf32>
      %30 = vector.shape_cast %27 : vector<4x1xf32> to vector<1x4x1xf32>
      tpu.vector_store %arg5[%c0_25, %c0_26, %c0_27], %30 {strides = array<i32>} : memref<1x4x1xf32, #tpu.memory_space<vmem>>, vector<1x4x1xf32>,
      %cst_28 = arith.constant 0.000000e+00 : f32
      %31 = vector.broadcast %cst_28 : f32 to vector<4x1xf32>
      %c0_29 = arith.constant 0 : index
      %c0_30 = arith.constant 0 : index
      %c0_31 = arith.constant 0 : index
      %32 = vector.load %arg6[%c0_29, %c0_30, %c0_31] : memref<1x4x1xf32, #tpu.memory_space<vmem>>, vector<1x4x1xf32>
      %33 = vector.shape_cast %32 : vector<1x4x1xf32> to vector<4x1xf32>
      %34 = vector.shape_cast %31 : vector<4x1xf32> to vector<1x4x1xf32>
      tpu.vector_store %arg6[%c0_29, %c0_30, %c0_31], %34 {strides = array<i32>} : memref<1x4x1xf32, #tpu.memory_space<vmem>>, vector<1x4x1xf32>,
    } else {
    }
    %cst_9 = arith.constant 1.000000e+00 : f32
    %11 = vector.broadcast %cst_9 : f32 to vector<256x1xf32>
    %c0_10 = arith.constant 0 : index
    %c0_11 = arith.constant 0 : index
    %c0_12 = arith.constant 0 : index
    %12 = vector.load %arg5[%c0_10, %c0_11, %c0_12] : memref<1x4x1xf32, #tpu.memory_space<vmem>>, vector<1x4x1xf32>
    %13 = vector.shape_cast %12 : vector<1x4x1xf32> to vector<4x1xf32>
    %cst_13 = arith.constant dense<0.000000e+00> : vector<4x1xf32>
    %14 = tpu.matmul %7, %11, %cst_13 {dimension_numbers = #tpu.dot_dimension_numbers<[1], [0], [0], [1], [0, 0, 1, 1], [], []>} : vector<4x256xf32>, vector<256x1xf32>, vector<4x1xf32> -> vector<4x1xf32>
    %15 = arith.addf %13, %14 : vector<4x1xf32>
    %c0_14 = arith.constant 0 : index
    %c0_15 = arith.constant 0 : index
    %c0_16 = arith.constant 0 : index
    %16 = vector.load %arg5[%c0_14, %c0_15, %c0_16] : memref<1x4x1xf32, #tpu.memory_space<vmem>>, vector<1x4x1xf32>
    %17 = vector.shape_cast %16 : vector<1x4x1xf32> to vector<4x1xf32>
    %18 = vector.shape_cast %15 : vector<4x1xf32> to vector<1x4x1xf32>
    tpu.vector_store %arg5[%c0_14, %c0_15, %c0_16], %18 {strides = array<i32>} : memref<1x4x1xf32, #tpu.memory_space<vmem>>, vector<1x4x1xf32>,
    %c0_17 = arith.constant 0 : index
    %c0_18 = arith.constant 0 : index
    %c0_19 = arith.constant 0 : index
    %19 = vector.load %arg6[%c0_17, %c0_18, %c0_19] : memref<1x4x1xf32, #tpu.memory_space<vmem>>, vector<1x4x1xf32>
    %20 = vector.shape_cast %19 : vector<1x4x1xf32> to vector<4x1xf32>
    %21 = arith.mulf %7, %7 : vector<4x256xf32>
    %cst_20 = arith.constant dense<0.000000e+00> : vector<4x1xf32>
    %22 = tpu.matmul %21, %11, %cst_20 {dimension_numbers = #tpu.dot_dimension_numbers<[1], [0], [0], [1], [0, 0, 1, 1], [], []>} : vector<4x256xf32>, vector<256x1xf32>, vector<4x1xf32> -> vector<4x1xf32>
    %23 = arith.addf %20, %22 : vector<4x1xf32>
    %c0_21 = arith.constant 0 : index
    %c0_22 = arith.constant 0 : index
    %c0_23 = arith.constant 0 : index
    %24 = vector.load %arg6[%c0_21, %c0_22, %c0_23] : memref<1x4x1xf32, #tpu.memory_space<vmem>>, vector<1x4x1xf32>
    %25 = vector.shape_cast %24 : vector<1x4x1xf32> to vector<4x1xf32>
    %26 = vector.shape_cast %23 : vector<4x1xf32> to vector<1x4x1xf32>
    tpu.vector_store %arg6[%c0_21, %c0_22, %c0_23], %26 {strides = array<i32>} : memref<1x4x1xf32, #tpu.memory_space<vmem>>, vector<1x4x1xf32>,
    return
  }
  func.func @transform_0(%arg0: i32, %arg1: i32) -> (i32, i32, i32) {
    %c0_i32 = arith.constant 0 : i32
    %c0_i32_0 = arith.constant 0 : i32
    return %arg0, %c0_i32, %arg1 : i32, i32, i32
  }
  func.func @transform_1(%arg0: i32, %arg1: i32) -> (i32, i32) {
    %c0_i32 = arith.constant 0 : i32
    %c0_i32_0 = arith.constant 0 : i32
    %c0_i32_1 = arith.constant 0 : i32
    return %c0_i32, %c0_i32_0 : i32, i32
  }
  func.func @transform_2(%arg0: i32, %arg1: i32) -> (i32, i32) {
    %c0_i32 = arith.constant 0 : i32
    %c0_i32_0 = arith.constant 0 : i32
    %c0_i32_1 = arith.constant 0 : i32
    return %c0_i32, %c0_i32_0 : i32, i32
  }
  func.func @transform_3(%arg0: i32, %arg1: i32) -> (i32, i32, i32) {
    %c0_i32 = arith.constant 0 : i32
    %c0_i32_0 = arith.constant 0 : i32
    %c0_i32_1 = arith.constant 0 : i32
    return %arg0, %c0_i32, %c0_i32_0 : i32, i32, i32
  }
  func.func @transform_4(%arg0: i32, %arg1: i32) -> (i32, i32, i32) {
    %c0_i32 = arith.constant 0 : i32
    %c0_i32_0 = arith.constant 0 : i32
    %c0_i32_1 = arith.constant 0 : i32
    return %arg0, %c0_i32, %c0_i32_0 : i32, i32, i32
  }
}

module attributes {stable_mosaic.version = 11 : i64} {
  func.func @_stats2_kernel(%arg0: i32, %arg1: i32, %arg2: memref<1x4x256xf32, #tpu.memory_space<vmem>>, %arg3: memref<8x4xf32, #tpu.memory_space<vmem>>, %arg4: memref<4x8xf32, #tpu.memory_space<vmem>>, %arg5: memref<16x4xf32, #tpu.memory_space<vmem>>, %arg6: memref<16x1xf32, #tpu.memory_space<vmem>>, %arg7: memref<8x16xf32, #tpu.memory_space<vmem>>, %arg8: memref<1x8x1xf32, #tpu.memory_space<vmem>>, %arg9: memref<1x8x1xf32, #tpu.memory_space<vmem>>) attributes {dimension_semantics = [#tpu.dimension_semantics<parallel>, #tpu.dimension_semantics<arbitrary>], iteration_bounds = array<i64: 2, 1>, scalar_prefetch = 0 : i64, scratch_operands = 0 : i64, tpu.core_type = #tpu.core_type<tc>, window_params = [{transform_indices = @transform_0, window_bounds = array<i64: 1, 4, 256>}, {pipeline_mode = #tpu.pipeline_mode<synchronous>, transform_indices = @transform_1, window_bounds = array<i64: 8, 4>}, {pipeline_mode = #tpu.pipeline_mode<synchronous>, transform_indices = @transform_2, window_bounds = array<i64: 4, 8>}, {pipeline_mode = #tpu.pipeline_mode<synchronous>, transform_indices = @transform_3, window_bounds = array<i64: 16, 4>}, {pipeline_mode = #tpu.pipeline_mode<synchronous>, transform_indices = @transform_4, window_bounds = array<i64: 16, 1>}, {pipeline_mode = #tpu.pipeline_mode<synchronous>, transform_indices = @transform_5, window_bounds = array<i64: 8, 16>}, {transform_indices = @transform_6, window_bounds = array<i64: 1, 8, 1>}, {transform_indices = @transform_7, window_bounds = array<i64: 1, 8, 1>}]} {
    %c0 = arith.constant 0 : index
    %c0_0 = arith.constant 0 : index
    %c0_1 = arith.constant 0 : index
    %0 = vector.load %arg2[%c0, %c0_0, %c0_1] : memref<1x4x256xf32, #tpu.memory_space<vmem>>, vector<1x4x256xf32>
    %1 = vector.shape_cast %0 : vector<1x4x256xf32> to vector<4x256xf32>
    %c0_2 = arith.constant 0 : index
    %c0_3 = arith.constant 0 : index
    %2 = vector.load %arg3[%c0_2, %c0_3] : memref<8x4xf32, #tpu.memory_space<vmem>>, vector<8x4xf32>
    %cst = arith.constant dense<0.000000e+00> : vector<8x256xf32>
    %3 = tpu.matmul %2, %1, %cst {dimension_numbers = #tpu.dot_dimension_numbers<[1], [0], [0], [1], [0, 0, 1, 1], [], []>} : vector<8x4xf32>, vector<4x256xf32>, vector<8x256xf32> -> vector<8x256xf32>
    %cst_4 = arith.constant 0.000000e+00 : f32
    %4 = vector.broadcast %cst_4 : f32 to vector<8x256xf32>
    %5 = arith.maximumf %3, %4 : vector<8x256xf32>
    %c0_5 = arith.constant 0 : index
    %c0_6 = arith.constant 0 : index
    %6 = vector.load %arg4[%c0_5, %c0_6] : memref<4x8xf32, #tpu.memory_space<vmem>>, vector<4x8xf32>
    %cst_7 = arith.constant dense<0.000000e+00> : vector<4x256xf32>
    %7 = tpu.matmul %6, %5, %cst_7 {dimension_numbers = #tpu.dot_dimension_numbers<[1], [0], [0], [1], [0, 0, 1, 1], [], []>} : vector<4x8xf32>, vector<8x256xf32>, vector<4x256xf32> -> vector<4x256xf32>
    %c0_8 = arith.constant 0 : index
    %c0_9 = arith.constant 0 : index
    %8 = vector.load %arg5[%c0_8, %c0_9] : memref<16x4xf32, #tpu.memory_space<vmem>>, vector<16x4xf32>
    %cst_10 = arith.constant dense<0.000000e+00> : vector<16x256xf32>
    %9 = tpu.matmul %8, %7, %cst_10 {dimension_numbers = #tpu.dot_dimension_numbers<[1], [0], [0], [1], [0, 0, 1, 1], [], []>} : vector<16x4xf32>, vector<4x256xf32>, vector<16x256xf32> -> vector<16x256xf32>
    %c0_11 = arith.constant 0 : index
    %c0_12 = arith.constant 0 : index
    %10 = vector.load %arg6[%c0_11, %c0_12] : memref<16x1xf32, #tpu.memory_space<vmem>>, vector<16x1xf32>
    %11 = vector.broadcast %10 : vector<16x1xf32> to vector<16x256xf32>
    %12 = arith.addf %9, %11 : vector<16x256xf32>
    %cst_13 = arith.constant 0.000000e+00 : f32
    %13 = vector.broadcast %cst_13 : f32 to vector<16x256xf32>
    %14 = arith.maximumf %12, %13 : vector<16x256xf32>
    %c0_14 = arith.constant 0 : index
    %c0_15 = arith.constant 0 : index
    %15 = vector.load %arg7[%c0_14, %c0_15] : memref<8x16xf32, #tpu.memory_space<vmem>>, vector<8x16xf32>
    %cst_16 = arith.constant dense<0.000000e+00> : vector<8x256xf32>
    %16 = tpu.matmul %15, %14, %cst_16 {dimension_numbers = #tpu.dot_dimension_numbers<[1], [0], [0], [1], [0, 0, 1, 1], [], []>} : vector<8x16xf32>, vector<16x256xf32>, vector<8x256xf32> -> vector<8x256xf32>
    %c0_i32 = arith.constant 0 : i32
    %17 = arith.cmpi eq, %arg1, %c0_i32 : i32
    %18 = arith.extui %17 : i1 to i32
    %c0_i32_17 = arith.constant 0 : i32
    %19 = arith.cmpi ne, %18, %c0_i32_17 : i32
    scf.if %19 {
      %cst_33 = arith.constant 0.000000e+00 : f32
      %36 = vector.broadcast %cst_33 : f32 to vector<8x1xf32>
      %c0_34 = arith.constant 0 : index
      %c0_35 = arith.constant 0 : index
      %c0_36 = arith.constant 0 : index
      %37 = vector.load %arg8[%c0_34, %c0_35, %c0_36] : memref<1x8x1xf32, #tpu.memory_space<vmem>>, vector<1x8x1xf32>
      %38 = vector.shape_cast %37 : vector<1x8x1xf32> to vector<8x1xf32>
      %39 = vector.shape_cast %36 : vector<8x1xf32> to vector<1x8x1xf32>
      tpu.vector_store %arg8[%c0_34, %c0_35, %c0_36], %39 {strides = array<i32>} : memref<1x8x1xf32, #tpu.memory_space<vmem>>, vector<1x8x1xf32>,
      %cst_37 = arith.constant 0.000000e+00 : f32
      %40 = vector.broadcast %cst_37 : f32 to vector<8x1xf32>
      %c0_38 = arith.constant 0 : index
      %c0_39 = arith.constant 0 : index
      %c0_40 = arith.constant 0 : index
      %41 = vector.load %arg9[%c0_38, %c0_39, %c0_40] : memref<1x8x1xf32, #tpu.memory_space<vmem>>, vector<1x8x1xf32>
      %42 = vector.shape_cast %41 : vector<1x8x1xf32> to vector<8x1xf32>
      %43 = vector.shape_cast %40 : vector<8x1xf32> to vector<1x8x1xf32>
      tpu.vector_store %arg9[%c0_38, %c0_39, %c0_40], %43 {strides = array<i32>} : memref<1x8x1xf32, #tpu.memory_space<vmem>>, vector<1x8x1xf32>,
    } else {
    }
    %cst_18 = arith.constant 1.000000e+00 : f32
    %20 = vector.broadcast %cst_18 : f32 to vector<256x1xf32>
    %c0_19 = arith.constant 0 : index
    %c0_20 = arith.constant 0 : index
    %c0_21 = arith.constant 0 : index
    %21 = vector.load %arg8[%c0_19, %c0_20, %c0_21] : memref<1x8x1xf32, #tpu.memory_space<vmem>>, vector<1x8x1xf32>
    %22 = vector.shape_cast %21 : vector<1x8x1xf32> to vector<8x1xf32>
    %cst_22 = arith.constant dense<0.000000e+00> : vector<8x1xf32>
    %23 = tpu.matmul %16, %20, %cst_22 {dimension_numbers = #tpu.dot_dimension_numbers<[1], [0], [0], [1], [0, 0, 1, 1], [], []>} : vector<8x256xf32>, vector<256x1xf32>, vector<8x1xf32> -> vector<8x1xf32>
    %24 = arith.addf %22, %23 : vector<8x1xf32>
    %c0_23 = arith.constant 0 : index
    %c0_24 = arith.constant 0 : index
    %c0_25 = arith.constant 0 : index
    %25 = vector.load %arg8[%c0_23, %c0_24, %c0_25] : memref<1x8x1xf32, #tpu.memory_space<vmem>>, vector<1x8x1xf32>
    %26 = vector.shape_cast %25 : vector<1x8x1xf32> to vector<8x1xf32>
    %27 = vector.shape_cast %24 : vector<8x1xf32> to vector<1x8x1xf32>
    tpu.vector_store %arg8[%c0_23, %c0_24, %c0_25], %27 {strides = array<i32>} : memref<1x8x1xf32, #tpu.memory_space<vmem>>, vector<1x8x1xf32>,
    %c0_26 = arith.constant 0 : index
    %c0_27 = arith.constant 0 : index
    %c0_28 = arith.constant 0 : index
    %28 = vector.load %arg9[%c0_26, %c0_27, %c0_28] : memref<1x8x1xf32, #tpu.memory_space<vmem>>, vector<1x8x1xf32>
    %29 = vector.shape_cast %28 : vector<1x8x1xf32> to vector<8x1xf32>
    %30 = arith.mulf %16, %16 : vector<8x256xf32>
    %cst_29 = arith.constant dense<0.000000e+00> : vector<8x1xf32>
    %31 = tpu.matmul %30, %20, %cst_29 {dimension_numbers = #tpu.dot_dimension_numbers<[1], [0], [0], [1], [0, 0, 1, 1], [], []>} : vector<8x256xf32>, vector<256x1xf32>, vector<8x1xf32> -> vector<8x1xf32>
    %32 = arith.addf %29, %31 : vector<8x1xf32>
    %c0_30 = arith.constant 0 : index
    %c0_31 = arith.constant 0 : index
    %c0_32 = arith.constant 0 : index
    %33 = vector.load %arg9[%c0_30, %c0_31, %c0_32] : memref<1x8x1xf32, #tpu.memory_space<vmem>>, vector<1x8x1xf32>
    %34 = vector.shape_cast %33 : vector<1x8x1xf32> to vector<8x1xf32>
    %35 = vector.shape_cast %32 : vector<8x1xf32> to vector<1x8x1xf32>
    tpu.vector_store %arg9[%c0_30, %c0_31, %c0_32], %35 {strides = array<i32>} : memref<1x8x1xf32, #tpu.memory_space<vmem>>, vector<1x8x1xf32>,
    return
  }
  func.func @transform_0(%arg0: i32, %arg1: i32) -> (i32, i32, i32) {
    %c0_i32 = arith.constant 0 : i32
    %c0_i32_0 = arith.constant 0 : i32
    return %arg0, %c0_i32, %arg1 : i32, i32, i32
  }
  func.func @transform_1(%arg0: i32, %arg1: i32) -> (i32, i32) {
    %c0_i32 = arith.constant 0 : i32
    %c0_i32_0 = arith.constant 0 : i32
    %c0_i32_1 = arith.constant 0 : i32
    return %c0_i32, %c0_i32_0 : i32, i32
  }
  func.func @transform_2(%arg0: i32, %arg1: i32) -> (i32, i32) {
    %c0_i32 = arith.constant 0 : i32
    %c0_i32_0 = arith.constant 0 : i32
    %c0_i32_1 = arith.constant 0 : i32
    return %c0_i32, %c0_i32_0 : i32, i32
  }
  func.func @transform_3(%arg0: i32, %arg1: i32) -> (i32, i32) {
    %c0_i32 = arith.constant 0 : i32
    %c0_i32_0 = arith.constant 0 : i32
    %c0_i32_1 = arith.constant 0 : i32
    return %c0_i32, %c0_i32_0 : i32, i32
  }
  func.func @transform_4(%arg0: i32, %arg1: i32) -> (i32, i32) {
    %c0_i32 = arith.constant 0 : i32
    %c0_i32_0 = arith.constant 0 : i32
    %c0_i32_1 = arith.constant 0 : i32
    return %c0_i32, %c0_i32_0 : i32, i32
  }
  func.func @transform_5(%arg0: i32, %arg1: i32) -> (i32, i32) {
    %c0_i32 = arith.constant 0 : i32
    %c0_i32_0 = arith.constant 0 : i32
    %c0_i32_1 = arith.constant 0 : i32
    return %c0_i32, %c0_i32_0 : i32, i32
  }
  func.func @transform_6(%arg0: i32, %arg1: i32) -> (i32, i32, i32) {
    %c0_i32 = arith.constant 0 : i32
    %c0_i32_0 = arith.constant 0 : i32
    %c0_i32_1 = arith.constant 0 : i32
    return %arg0, %c0_i32, %c0_i32_0 : i32, i32, i32
  }
  func.func @transform_7(%arg0: i32, %arg1: i32) -> (i32, i32, i32) {
    %c0_i32 = arith.constant 0 : i32
    %c0_i32_0 = arith.constant 0 : i32
    %c0_i32_1 = arith.constant 0 : i32
    return %arg0, %c0_i32, %c0_i32_0 : i32, i32, i32
  }
}

module attributes {stable_mosaic.version = 11 : i64} {
  func.func @_final_kernel(%arg0: i32, %arg1: i32, %arg2: memref<1x4x256xf32, #tpu.memory_space<vmem>>, %arg3: memref<8x4xf32, #tpu.memory_space<vmem>>, %arg4: memref<4x8xf32, #tpu.memory_space<vmem>>, %arg5: memref<16x4xf32, #tpu.memory_space<vmem>>, %arg6: memref<16x1xf32, #tpu.memory_space<vmem>>, %arg7: memref<8x16xf32, #tpu.memory_space<vmem>>, %arg8: memref<8x1xf32, #tpu.memory_space<vmem>>, %arg9: memref<1x8x256xf32, #tpu.memory_space<vmem>>) attributes {dimension_semantics = [#tpu.dimension_semantics<parallel>, #tpu.dimension_semantics<parallel>], iteration_bounds = array<i64: 2, 1>, scalar_prefetch = 0 : i64, scratch_operands = 0 : i64, tpu.core_type = #tpu.core_type<tc>, window_params = [{transform_indices = @transform_0, window_bounds = array<i64: 1, 4, 256>}, {pipeline_mode = #tpu.pipeline_mode<synchronous>, transform_indices = @transform_1, window_bounds = array<i64: 8, 4>}, {pipeline_mode = #tpu.pipeline_mode<synchronous>, transform_indices = @transform_2, window_bounds = array<i64: 4, 8>}, {pipeline_mode = #tpu.pipeline_mode<synchronous>, transform_indices = @transform_3, window_bounds = array<i64: 16, 4>}, {pipeline_mode = #tpu.pipeline_mode<synchronous>, transform_indices = @transform_4, window_bounds = array<i64: 16, 1>}, {pipeline_mode = #tpu.pipeline_mode<synchronous>, transform_indices = @transform_5, window_bounds = array<i64: 8, 16>}, {pipeline_mode = #tpu.pipeline_mode<synchronous>, transform_indices = @transform_6, window_bounds = array<i64: 8, 1>}, {transform_indices = @transform_7, window_bounds = array<i64: 1, 8, 256>}]} {
    %c0 = arith.constant 0 : index
    %c0_0 = arith.constant 0 : index
    %c0_1 = arith.constant 0 : index
    %0 = vector.load %arg2[%c0, %c0_0, %c0_1] : memref<1x4x256xf32, #tpu.memory_space<vmem>>, vector<1x4x256xf32>
    %1 = vector.shape_cast %0 : vector<1x4x256xf32> to vector<4x256xf32>
    %c0_2 = arith.constant 0 : index
    %c0_3 = arith.constant 0 : index
    %2 = vector.load %arg3[%c0_2, %c0_3] : memref<8x4xf32, #tpu.memory_space<vmem>>, vector<8x4xf32>
    %cst = arith.constant dense<0.000000e+00> : vector<8x256xf32>
    %3 = tpu.matmul %2, %1, %cst {dimension_numbers = #tpu.dot_dimension_numbers<[1], [0], [0], [1], [0, 0, 1, 1], [], []>} : vector<8x4xf32>, vector<4x256xf32>, vector<8x256xf32> -> vector<8x256xf32>
    %cst_4 = arith.constant 0.000000e+00 : f32
    %4 = vector.broadcast %cst_4 : f32 to vector<8x256xf32>
    %5 = arith.maximumf %3, %4 : vector<8x256xf32>
    %c0_5 = arith.constant 0 : index
    %c0_6 = arith.constant 0 : index
    %6 = vector.load %arg4[%c0_5, %c0_6] : memref<4x8xf32, #tpu.memory_space<vmem>>, vector<4x8xf32>
    %cst_7 = arith.constant dense<0.000000e+00> : vector<4x256xf32>
    %7 = tpu.matmul %6, %5, %cst_7 {dimension_numbers = #tpu.dot_dimension_numbers<[1], [0], [0], [1], [0, 0, 1, 1], [], []>} : vector<4x8xf32>, vector<8x256xf32>, vector<4x256xf32> -> vector<4x256xf32>
    %c0_8 = arith.constant 0 : index
    %c0_9 = arith.constant 0 : index
    %8 = vector.load %arg5[%c0_8, %c0_9] : memref<16x4xf32, #tpu.memory_space<vmem>>, vector<16x4xf32>
    %cst_10 = arith.constant dense<0.000000e+00> : vector<16x256xf32>
    %9 = tpu.matmul %8, %7, %cst_10 {dimension_numbers = #tpu.dot_dimension_numbers<[1], [0], [0], [1], [0, 0, 1, 1], [], []>} : vector<16x4xf32>, vector<4x256xf32>, vector<16x256xf32> -> vector<16x256xf32>
    %c0_11 = arith.constant 0 : index
    %c0_12 = arith.constant 0 : index
    %10 = vector.load %arg6[%c0_11, %c0_12] : memref<16x1xf32, #tpu.memory_space<vmem>>, vector<16x1xf32>
    %11 = vector.broadcast %10 : vector<16x1xf32> to vector<16x256xf32>
    %12 = arith.addf %9, %11 : vector<16x256xf32>
    %cst_13 = arith.constant 0.000000e+00 : f32
    %13 = vector.broadcast %cst_13 : f32 to vector<16x256xf32>
    %14 = arith.maximumf %12, %13 : vector<16x256xf32>
    %c0_14 = arith.constant 0 : index
    %c0_15 = arith.constant 0 : index
    %15 = vector.load %arg7[%c0_14, %c0_15] : memref<8x16xf32, #tpu.memory_space<vmem>>, vector<8x16xf32>
    %cst_16 = arith.constant dense<0.000000e+00> : vector<8x256xf32>
    %16 = tpu.matmul %15, %14, %cst_16 {dimension_numbers = #tpu.dot_dimension_numbers<[1], [0], [0], [1], [0, 0, 1, 1], [], []>} : vector<8x16xf32>, vector<16x256xf32>, vector<8x256xf32> -> vector<8x256xf32>
    %c0_17 = arith.constant 0 : index
    %c0_18 = arith.constant 0 : index
    %17 = vector.load %arg8[%c0_17, %c0_18] : memref<8x1xf32, #tpu.memory_space<vmem>>, vector<8x1xf32>
    %18 = vector.broadcast %17 : vector<8x1xf32> to vector<8x256xf32>
    %19 = arith.addf %16, %18 : vector<8x256xf32>
    %c0_19 = arith.constant 0 : index
    %c0_20 = arith.constant 0 : index
    %c0_21 = arith.constant 0 : index
    %20 = vector.load %arg9[%c0_19, %c0_20, %c0_21] : memref<1x8x256xf32, #tpu.memory_space<vmem>>, vector<1x8x256xf32>
    %21 = vector.shape_cast %20 : vector<1x8x256xf32> to vector<8x256xf32>
    %22 = vector.shape_cast %19 : vector<8x256xf32> to vector<1x8x256xf32>
    tpu.vector_store %arg9[%c0_19, %c0_20, %c0_21], %22 {strides = array<i32>} : memref<1x8x256xf32, #tpu.memory_space<vmem>>, vector<1x8x256xf32>,
    return
  }
  func.func @transform_0(%arg0: i32, %arg1: i32) -> (i32, i32, i32) {
    %c0_i32 = arith.constant 0 : i32
    %c0_i32_0 = arith.constant 0 : i32
    return %arg0, %c0_i32, %arg1 : i32, i32, i32
  }
  func.func @transform_1(%arg0: i32, %arg1: i32) -> (i32, i32) {
    %c0_i32 = arith.constant 0 : i32
    %c0_i32_0 = arith.constant 0 : i32
    %c0_i32_1 = arith.constant 0 : i32
    return %c0_i32, %c0_i32_0 : i32, i32
  }
  func.func @transform_2(%arg0: i32, %arg1: i32) -> (i32, i32) {
    %c0_i32 = arith.constant 0 : i32
    %c0_i32_0 = arith.constant 0 : i32
    %c0_i32_1 = arith.constant 0 : i32
    return %c0_i32, %c0_i32_0 : i32, i32
  }
  func.func @transform_3(%arg0: i32, %arg1: i32) -> (i32, i32) {
    %c0_i32 = arith.constant 0 : i32
    %c0_i32_0 = arith.constant 0 : i32
    %c0_i32_1 = arith.constant 0 : i32
    return %c0_i32, %c0_i32_0 : i32, i32
  }
  func.func @transform_4(%arg0: i32, %arg1: i32) -> (i32, i32) {
    %c0_i32 = arith.constant 0 : i32
    %c0_i32_0 = arith.constant 0 : i32
    %c0_i32_1 = arith.constant 0 : i32
    return %c0_i32, %c0_i32_0 : i32, i32
  }
  func.func @transform_5(%arg0: i32, %arg1: i32) -> (i32, i32) {
    %c0_i32 = arith.constant 0 : i32
    %c0_i32_0 = arith.constant 0 : i32
    %c0_i32_1 = arith.constant 0 : i32
    return %c0_i32, %c0_i32_0 : i32, i32
  }
  func.func @transform_6(%arg0: i32, %arg1: i32) -> (i32, i32) {
    %c0_i32 = arith.constant 0 : i32
    %c0_i32_0 = arith.constant 0 : i32
    %c0_i32_1 = arith.constant 0 : i32
    return %c0_i32, %c0_i32_0 : i32, i32
  }
  func.func @transform_7(%arg0: i32, %arg1: i32) -> (i32, i32, i32) {
    %c0_i32 = arith.constant 0 : i32
    %c0_i32_0 = arith.constant 0 : i32
    return %arg0, %c0_i32, %arg1 : i32, i32, i32
  }
}

</mosaic_0001>

<llo_original>
// kernel: seqbottle_forward.3
$region0: #{seqbottle_forward.3}
  #allocation0 [shape = 'u32[]', space=smem, size = 0x4, offset = 0x4, fixed_abs, tag = 'smem constant byte address 0x4 - core index']
  #allocation1 [shape = 'u32[144,128]{1,0:T(1,128)}', space=vmem, size = 0x12000, scoped, tag = 'internal scratch']
  %s0 = inlined_call_operand.vmem [shape: f32[2,4,256], index: 0, kind: input, shape index: {}]
  %s1 = inlined_call_operand.vmem [shape: f32[8,4], index: 1, kind: input, shape index: {}]
  %s2 = inlined_call_operand.vmem [shape: f32[4,8], index: 2, kind: input, shape index: {}]
  %s3 = inlined_call_operand.vmem [shape: f32[2,4,1], index: 3, kind: output, shape index: {0}]
  %s4 = inlined_call_operand.vmem [shape: f32[2,4,1], index: 4, kind: output, shape index: {1}]
  %5 = xla_tuple %s3, %s4
  %s6 = sld [smem:[#allocation0]]
  $region57: #{seqbottle_forward.3} parent=0
    _
  %s8 = ssub.s32 1, %s6
  %s9 = scalar_select 0, %s8, %s6
  loop: start=0, step=1, limit=4
  $region2: #{seqbottle_forward.3} parent=0 // loop_pre_header
    _
  $region3: #{seqbottle_forward.3} parent=0 // loop_header
    %s11 = sphi 0, %s15
    %p12 = scmp.ge.s32.totalorder %s11, 4
    %s18 = sphi 0, %s30
    %s19 = sphi 0, %s26
    %s20 = sphi 0, %s18
    %s21 = sphi 0, %s19
    %s22 = sphi 0, %s20
    %s23 = sphi 0, %s21
    %s35 = sphi 0, %s37
    %s38 = sphi 0, %s35
    %s39 = sphi 0, %s38
    %s55 = sphi 0, %s39
    %s59 = sphi 0, %s59
    %s61 = sphi 0, %s59
    %s62 = sphi 0, %s61
    %s76 = sphi 0, %s62
    %s80 = sphi 0, %s80
    %s82 = sphi 0, %s80
    %s83 = sphi 0, %s82
    %s97 = sphi 0, %s83
    %s103 = sphi 0, %s105
    %s106 = sphi 0, %s103
    %s107 = sphi 0, %s106
    %s123 = sphi 0, %s107
    %s129 = sphi 0, %s131
    %s132 = sphi 0, %s129
    %s133 = sphi 0, %s132
    %s149 = sphi 0, %s133
  $region4: #{seqbottle_forward.3} parent=0 // loop_header_branch
    %14 = sbr.rel (%p12) target = $region8
  $region5: #{seqbottle_forward.3} parent=0 // loop_body
    %s16 = ssub.s32 %s11, 1
    %s17 = ssub.s32 %s11, 2
    %s24 = sadd.s32 1, %s19
    %p25 = scmp.ge.s32.totalorder %s24, 1
    %s26 = scalar_select %p25, 0, %s24
    %s27 = sadd.s32 1, %s18
    %s28 = scalar_select %p25, %s27, %s18
    %p29 = scmp.ge.s32.totalorder %s28, 2
    %s30 = scalar_select %p29, 0, %s28
    %s31 = ssub.s32 %s18, %s30
    %s32 = ssub.s32 %s19, %s26
    %s33 = sor.u32 %s31, %s32
    %p34 = scmp.eq.s32.totalorder %s33, 0
    %s36 = sadd.s32 %s35, 1
    %s37 = scalar_select %p34, %s35, %s36
    %p40 = pneg %p34
    %p41 = scmp.eq.s32.totalorder %s11, 1
    %p42 = por %p40, %p41
    %p43 = scmp.ne.s32.totalorder %s35, %s38
    %p44 = scmp.eq.s32.totalorder %s11, 0
    %p45 = por %p43, %p44
    %p46 = scmp.ne.s32.totalorder %s35, %s38
    %p47 = scmp.eq.s32.totalorder %s16, 1
    %p48 = por %p46, %p47
    %p49 = scmp.ne.s32.totalorder %s38, %s39
    %p50 = scmp.eq.s32.totalorder %s16, 0
    %p51 = por %p49, %p50
    %p52 = scmp.ne.s32.totalorder %s38, %s39
    %p53 = scmp.eq.s32.totalorder %s17, 1
    %p54 = por %p52, %p53
    %p56 = scmp.ne.s32.totalorder %s39, %s55
    %p57 = scmp.eq.s32.totalorder %s17, 0
    %p58 = por %p56, %p57
    %s60 = sadd.s32 %s59, 1
    %p63 = scmp.eq.s32.totalorder %s11, 1
    %p64 = scmp.ne.s32.totalorder %s59, %s61
    %p65 = scmp.eq.s32.totalorder %s11, 0
    %p66 = por %p64, %p65
    %p67 = scmp.ne.s32.totalorder %s59, %s61
    %p68 = scmp.eq.s32.totalorder %s16, 1
    %p69 = por %p67, %p68
    %p70 = scmp.ne.s32.totalorder %s61, %s62
    %p71 = scmp.eq.s32.totalorder %s16, 0
    %p72 = por %p70, %p71
    %p73 = scmp.ne.s32.totalorder %s61, %s62
    %p74 = scmp.eq.s32.totalorder %s17, 1
    %p75 = por %p73, %p74
    %p77 = scmp.ne.s32.totalorder %s62, %s76
    %p78 = scmp.eq.s32.totalorder %s17, 0
    %p79 = por %p77, %p78
    %s81 = sadd.s32 %s80, 1
    %p84 = scmp.eq.s32.totalorder %s11, 1
    %p85 = scmp.ne.s32.totalorder %s80, %s82
    %p86 = scmp.eq.s32.totalorder %s11, 0
    %p87 = por %p85, %p86
    %p88 = scmp.ne.s32.totalorder %s80, %s82
    %p89 = scmp.eq.s32.totalorder %s16, 1
    %p90 = por %p88, %p89
    %p91 = scmp.ne.s32.totalorder %s82, %s83
    %p92 = scmp.eq.s32.totalorder %s16, 0
    %p93 = por %p91, %p92
    %p94 = scmp.ne.s32.totalorder %s82, %s83
    %p95 = scmp.eq.s32.totalorder %s17, 1
    %p96 = por %p94, %p95
    %p98 = scmp.ne.s32.totalorder %s83, %s97
    %p99 = scmp.eq.s32.totalorder %s17, 0
    %p100 = por %p98, %p99
    %s101 = ssub.s32 %s18, %s30
    %p102 = scmp.eq.s32.totalorder %s101, 0
    %s104 = sadd.s32 %s103, 1
    %s105 = scalar_select %p102, %s103, %s104
    %p108 = pneg %p102
    %p109 = scmp.eq.s32.totalorder %s11, 1
    %p110 = por %p108, %p109
    %p111 = scmp.ne.s32.totalorder %s103, %s106
    %p112 = scmp.eq.s32.totalorder %s11, 0
    %p113 = por %p111, %p112
    %p114 = scmp.ne.s32.totalorder %s103, %s106
    %p115 = scmp.eq.s32.totalorder %s16, 1
    %p116 = por %p114, %p115
    %p117 = scmp.ne.s32.totalorder %s106, %s107
    %p118 = scmp.eq.s32.totalorder %s16, 0
    %p119 = por %p117, %p118
    %p120 = scmp.ne.s32.totalorder %s106, %s107
    %p121 = scmp.eq.s32.totalorder %s17, 1
    %p122 = por %p120, %p121
    %p124 = scmp.ne.s32.totalorder %s107, %s123
    %p125 = scmp.eq.s32.totalorder %s17, 0
    %p126 = por %p124, %p125
    %s127 = ssub.s32 %s18, %s30
    %p128 = scmp.eq.s32.totalorder %s127, 0
    %s130 = sadd.s32 %s129, 1
    %s131 = scalar_select %p128, %s129, %s130
    %p134 = pneg %p128
    %p135 = scmp.eq.s32.totalorder %s11, 1
    %p136 = por %p134, %p135
    %p137 = scmp.ne.s32.totalorder %s129, %s132
    %p138 = scmp.eq.s32.totalorder %s11, 0
    %p139 = por %p137, %p138
    %p140 = scmp.ne.s32.totalorder %s129, %s132
    %p141 = scmp.eq.s32.totalorder %s16, 1
    %p142 = por %p140, %p141
    %p143 = scmp.ne.s32.totalorder %s132, %s133
    %p144 = scmp.eq.s32.totalorder %s16, 0
    %p145 = por %p143, %p144
    %p146 = scmp.ne.s32.totalorder %s132, %s133
    %p147 = scmp.eq.s32.totalorder %s17, 1
    %p148 = por %p146, %p147
    %p150 = scmp.ne.s32.totalorder %s133, %s149
    %p151 = scmp.eq.s32.totalorder %s17, 0
    %p152 = por %p150, %p151
    %p153 = scmp.le.s32.totalorder 1, %s11
    %p154 = scmp.lt.s32.totalorder %s11, 3
    %p155 = pnand %p153, %p154
    %p156 = pneg %p155
    // Predicated region
    $region9: #{seqbottle_forward.3} parent=5 // pred_check
      _
    $region10: #{seqbottle_forward.3} parent=5 // pred_check_branch
      %158 = sbr.rel (%p155) target = $region12
    $region11: #{seqbottle_forward.3} parent=5 // pred_region
      %s159 = ssub.s32 %s11, 1
      // Predicated region
      $region13: #{seqbottle_forward.3} parent=11 // pred_check
        %p160 = pneg %p72
      $region14: #{seqbottle_forward.3} parent=11 // pred_check_branch
        %162 = sbr.rel (%p160) target = $region16
      $region15: #{seqbottle_forward.3} parent=11 // pred_region
        _
      $region16: #{seqbottle_forward.3} parent=11 // pred_fallthru
        _
      // Predicated region
      $region17: #{seqbottle_forward.3} parent=11 // pred_check
        %p163 = pneg %p93
      $region18: #{seqbottle_forward.3} parent=11 // pred_check_branch
        %165 = sbr.rel (%p163) target = $region20
      $region19: #{seqbottle_forward.3} parent=11 // pred_region
        _
      $region20: #{seqbottle_forward.3} parent=11 // pred_fallthru
        _
    $region12: #{seqbottle_forward.3} parent=5 // pred_fallthru
      _
    %p166 = scmp.lt.s32.totalorder %s11, 2
    // Predicated region
    $region21: #{seqbottle_forward.3} parent=5 // pred_check
      %p167 = pneg %p166
    $region22: #{seqbottle_forward.3} parent=5 // pred_check_branch
      %169 = sbr.rel (%p167) target = $region24
    $region23: #{seqbottle_forward.3} parent=5 // pred_region
      // Predicated region
      $region25: #{seqbottle_forward.3} parent=23 // pred_check
        %p170 = pneg %p45
      $region26: #{seqbottle_forward.3} parent=23 // pred_check_branch
        %172 = sbr.rel (%p170) target = $region28
      $region27: #{seqbottle_forward.3} parent=23 // pred_region
        %s173 = smul.u32 2, %s19
        %p174 = scmp.lt.s32.totalorder %s18, 1
        %s175 = scalar_select %p174, %s18, 1
        %p176 = scmp.lt.s32.totalorder %s173, 1
        %s177 = scalar_select %p176, %s173, 1
        %s178 = smul.addr %s175, 2
        %s179 = sadd.s32 %s177, %s178
        %s180 = smul.addr %s179, 4
        %s181 = scalar_lea.vmem %s0, %s180
        %s182 = smul.u32 2, %s19
      $region28: #{seqbottle_forward.3} parent=23 // pred_fallthru
        _
    $region24: #{seqbottle_forward.3} parent=5 // pred_fallthru
      _
    %p183 = scmp.le.s32.totalorder 1, %s11
    %p184 = scmp.lt.s32.totalorder %s11, 3
    %p185 = pnand %p183, %p184
    %p186 = pneg %p185
    // Predicated region
    $region29: #{seqbottle_forward.3} parent=5 // pred_check
      _
    $region30: #{seqbottle_forward.3} parent=5 // pred_check_branch
      %188 = sbr.rel (%p185) target = $region32
    $region31: #{seqbottle_forward.3} parent=5 // pred_region
      %s189 = ssub.s32 %s11, 1
      %s190 = smul.u32 2, %s21
      %p191 = scmp.lt.s32.totalorder %s20, 1
      %s192 = scalar_select %p191, %s20, 1
      %p193 = scmp.lt.s32.totalorder %s190, 1
      %s194 = scalar_select %p193, %s190, 1
      %s195 = smul.addr %s192, 2
      %s196 = sadd.s32 %s194, %s195
      %s197 = smul.addr %s196, 4
      %s198 = scalar_lea.vmem %s0, %s197
      %p199 = pneg %p51
      %p200 = pneg %p48
      %p201 = pneg %p72
      %p202 = pneg %p69
      %p203 = pneg %p93
      %p204 = pneg %p90
      %p205 = pneg %p119
      %p206 = pneg %p116
      %p207 = scmp.lt.s32.totalorder %s20, 1
      %s208 = scalar_select %p207, %s20, 1
      %s209 = smul.addr %s208, 4
      %s210 = scalar_lea.vmem %s3, %s209
      %p211 = pneg %p145
      %p212 = pneg %p142
      %p213 = scmp.lt.s32.totalorder %s20, 1
      %s214 = scalar_select %p213, %s20, 1
      %s215 = smul.addr %s214, 4
      %s216 = scalar_lea.vmem %s4, %s215
      %s217 = smul.u32 2, %s21
      %p218 = scmp.lt.s32.totalorder %s20, 1
      %s219 = scalar_select %p218, %s20, 1
      %p220 = scmp.lt.s32.totalorder %s217, 1
      %s221 = scalar_select %p220, %s217, 1
      %s222 = smul.addr %s219, 2
      %s223 = sadd.s32 %s221, %s222
      %s224 = smul.addr %s223, 4
      %s225 = scalar_lea.vmem %s0, %s224
      %s226 = smul.u32 2, %s21
      %p227 = scmp.lt.s32.totalorder %s20, 1
      %s228 = scalar_select %p227, %s20, 1
      %s229 = smul.addr %s228, 4
      %s230 = scalar_lea.vmem %s3, %s229
      %p231 = scmp.lt.s32.totalorder %s20, 1
      %s232 = scalar_select %p231, %s20, 1
      %s233 = smul.addr %s232, 4
      %s234 = scalar_lea.vmem %s4, %s233
      %v235 = vld [vmem:[%s225] sm:$0xff]
      %v236 = vld [vmem:[%s1] sm:$0xff]
      %v238 = vcombine.high %v235, %v235
      %vm239 = vcmask 31744
      %v241 = vsel %vm239, %v236, 0
      %vm243 = vcmask 1043456
      %v244 = vsel %vm243, %v235, 0
      %v246 = vsel %vm243, %v238, 0
      %248 = vmatprep.subr.mxu0 %v246
      %249 = vmatpush1.msra.mxu0 %v244
      %250 = vmatprep.subr.mxu0 0.0
      %251 = vmatpush1.msra.mxu0 0.0
      %252 = vmatprep.subr.mxu0 0.0
      %253 = vmatpush1.msra.mxu0 0.0
      %254 = vmatprep.subr.mxu0 0.0
      %255 = vmatpush1.msra.mxu0 0.0
      %256 = vmatprep.subr.mxu0 0.0
      %257 = vmatpush1.msra.mxu0 0.0
      %258 = vmatprep.subr.mxu0 0.0
      %259 = vmatpush1.msra.mxu0 0.0
      %260 = vmatprep.subr.mxu0 0.0
      %261 = vmatpush1.msra.mxu0 0.0
      %262 = vmatprep.subr.mxu0 0.0
      %263 = vmatpush1.msra.mxu0 0.0
      %264 = vmatprep.subr.mxu0 0.0
      %265 = vmatpush1.msra.mxu0 0.0
      %266 = vmatprep.subr.mxu0 0.0
      %267 = vmatpush1.msra.mxu0 0.0
      %268 = vmatprep.subr.mxu0 0.0
      %269 = vmatpush1.msra.mxu0 0.0
      %270 = vmatprep.subr.mxu0 0.0
      %271 = vmatpush1.msra.mxu0 0.0
      %272 = vmatprep.subr.mxu0 0.0
      %273 = vmatpush1.msra.mxu0 0.0
      %274 = vmatprep.subr.mxu0 0.0
      %275 = vmatpush1.msra.mxu0 0.0
      %276 = vmatprep.subr.mxu0 0.0
      %277 = vmatpush1.msra.mxu0 0.0
      %278 = vmatprep.subr.mxu0 0.0
      %279 = vmatpush1.msra.mxu0 0.0
      %280 = vmatprep.subr.mxu0 0.0
      %281 = vmatpush1.msra.mxu0 0.0
      %282 = vmatprep.subr.mxu0 0.0
      %283 = vmatpush1.msra.mxu0 0.0
      %284 = vmatprep.subr.mxu0 0.0
      %285 = vmatpush1.msra.mxu0 0.0
      %286 = vmatprep.subr.mxu0 0.0
      %287 = vmatpush1.msra.mxu0 0.0
      %288 = vmatprep.subr.mxu0 0.0
      %289 = vmatpush1.msra.mxu0 0.0
      %290 = vmatprep.subr.mxu0 0.0
      %291 = vmatpush1.msra.mxu0 0.0
      %292 = vmatprep.subr.mxu0 0.0
      %293 = vmatpush1.msra.mxu0 0.0
      %294 = vmatprep.subr.mxu0 0.0
      %295 = vmatpush1.msra.mxu0 0.0
      %296 = vmatprep.subr.mxu0 0.0
      %297 = vmatpush1.msra.mxu0 0.0
      %298 = vmatprep.subr.mxu0 0.0
      %299 = vmatpush1.msra.mxu0 0.0
      %300 = vmatprep.subr.mxu0 0.0
      %301 = vmatpush1.msra.mxu0 0.0
      %302 = vmatprep.subr.mxu0 0.0
      %303 = vmatpush1.msra.mxu0 0.0
      %304 = vmatprep.subr.mxu0 0.0
      %305 = vmatpush1.msra.mxu0 0.0
      %306 = vmatprep.subr.mxu0 0.0
      %307 = vmatpush1.msra.mxu0 0.0
      %308 = vmatprep.subr.mxu0 0.0
      %309 = vmatpush1.msra.mxu0 0.0
      %310 = vmatprep.subr.mxu0 0.0
      %311 = vmatpush1.msra.mxu0 0.0
      %312 = vmatprep.mubr.f32.mxu0 0.0
      %313 = vmatmul.mubr.f32.gmra.mrb[0].mxu0 %v241
      %v314 = vpop.f32.mrb[0].mxu0
      %v315 = vadd.f32 0.0, %v314
      %v316 = vpop.f32.mrb[0].mxu0
      %v317 = vadd.f32 0.0, %v316
      %318 = vdwg.mxu0
      %v319 = vmax.f32 %v315, 0.0
      %v320 = vmax.f32 %v317, 0.0
      %v321 = vld [vmem:[%s2] sm:$0xf]
      %vm322 = vcmask 64512
      %v324 = vsel %vm322, %v321, 0
      %326 = vmatprep.subr.mxu0 %v320
      %327 = vmatpush1.msra.mxu0 %v319
      %328 = vmatprep.subr.mxu0 0.0
      %329 = vmatpush1.msra.mxu0 0.0
      %330 = vmatprep.subr.mxu0 0.0
      %331 = vmatpush1.msra.mxu0 0.0
      %332 = vmatprep.subr.mxu0 0.0
      %333 = vmatpush1.msra.mxu0 0.0
      %334 = vmatprep.subr.mxu0 0.0
      %335 = vmatpush1.msra.mxu0 0.0
      %336 = vmatprep.subr.mxu0 0.0
      %337 = vmatpush1.msra.mxu0 0.0
      %338 = vmatprep.subr.mxu0 0.0
      %339 = vmatpush1.msra.mxu0 0.0
      %340 = vmatprep.subr.mxu0 0.0
      %341 = vmatpush1.msra.mxu0 0.0
      %342 = vmatprep.subr.mxu0 0.0
      %343 = vmatpush1.msra.mxu0 0.0
      %344 = vmatprep.subr.mxu0 0.0
      %345 = vmatpush1.msra.mxu0 0.0
      %346 = vmatprep.subr.mxu0 0.0
      %347 = vmatpush1.msra.mxu0 0.0
      %348 = vmatprep.subr.mxu0 0.0
      %349 = vmatpush1.msra.mxu0 0.0
      %350 = vmatprep.subr.mxu0 0.0
      %351 = vmatpush1.msra.mxu0 0.0
      %352 = vmatprep.subr.mxu0 0.0
      %353 = vmatpush1.msra.mxu0 0.0
      %354 = vmatprep.subr.mxu0 0.0
      %355 = vmatpush1.msra.mxu0 0.0
      %356 = vmatprep.subr.mxu0 0.0
      %357 = vmatpush1.msra.mxu0 0.0
      %358 = vmatprep.subr.mxu0 0.0
      %359 = vmatpush1.msra.mxu0 0.0
      %360 = vmatprep.subr.mxu0 0.0
      %361 = vmatpush1.msra.mxu0 0.0
      %362 = vmatprep.subr.mxu0 0.0
      %363 = vmatpush1.msra.mxu0 0.0
      %364 = vmatprep.subr.mxu0 0.0
      %365 = vmatpush1.msra.mxu0 0.0
      %366 = vmatprep.subr.mxu0 0.0
      %367 = vmatpush1.msra.mxu0 0.0
      %368 = vmatprep.subr.mxu0 0.0
      %369 = vmatpush1.msra.mxu0 0.0
      %370 = vmatprep.subr.mxu0 0.0
      %371 = vmatpush1.msra.mxu0 0.0
      %372 = vmatprep.subr.mxu0 0.0
      %373 = vmatpush1.msra.mxu0 0.0
      %374 = vmatprep.subr.mxu0 0.0
      %375 = vmatpush1.msra.mxu0 0.0
      %376 = vmatprep.subr.mxu0 0.0
      %377 = vmatpush1.msra.mxu0 0.0
      %378 = vmatprep.subr.mxu0 0.0
      %379 = vmatpush1.msra.mxu0 0.0
      %380 = vmatprep.subr.mxu0 0.0
      %381 = vmatpush1.msra.mxu0 0.0
      %382 = vmatprep.subr.mxu0 0.0
      %383 = vmatpush1.msra.mxu0 0.0
      %384 = vmatprep.subr.mxu0 0.0
      %385 = vmatpush1.msra.mxu0 0.0
      %386 = vmatprep.subr.mxu0 0.0
      %387 = vmatpush1.msra.mxu0 0.0
      %388 = vmatprep.subr.mxu0 0.0
      %389 = vmatpush1.msra.mxu0 0.0
      %390 = vmatprep.mubr.f32.mxu0 0.0
      %391 = vmatmul.mubr.f32.gmra.mrb[0].mxu0 %v324
      %v392 = vpop.f32.mrb[0].mxu0
      %v393 = vadd.f32 0.0, %v392
      %v394 = vpop.f32.mrb[0].mxu0
      %v395 = vadd.f32 0.0, %v394
      %396 = vdwg.mxu0
      %p397 = scmp.eq.s32.totalorder %s21, 0
      // Predicated region
      $region33: #{seqbottle_forward.3} parent=31 // pred_check
        %p398 = pneg %p397
      $region34: #{seqbottle_forward.3} parent=31 // pred_check_branch
        %400 = sbr.rel (%p398) target = $region36
      $region35: #{seqbottle_forward.3} parent=31 // pred_region
        %vm401 = vcmask 3072
        %402 = vst.msk [vmem:[%s230] sm:$0xf] %vm401, 0.0
        %403 = vst.msk [vmem:[%s234] sm:$0xf] %vm401, 0.0
      $region36: #{seqbottle_forward.3} parent=31 // pred_fallthru
        _
      %v404 = vld [vmem:[%s230] sm:$0xf]
      %405 = vmatprep.subr.mxu0 0.0
      %406 = vmatpush1.msra.mxu0 1.0
      %407 = vmatprep.subr.mxu0 0.0
      %408 = vmatpush1.msra.mxu0 1.0
      %409 = vmatprep.subr.mxu0 0.0
      %410 = vmatpush1.msra.mxu0 1.0
      %411 = vmatprep.subr.mxu0 0.0
      %412 = vmatpush1.msra.mxu0 1.0
      %413 = vmatprep.subr.mxu0 0.0
      %414 = vmatpush1.msra.mxu0 1.0
      %415 = vmatprep.subr.mxu0 0.0
      %416 = vmatpush1.msra.mxu0 1.0
      %417 = vmatprep.subr.mxu0 0.0
      %418 = vmatpush1.msra.mxu0 1.0
      %419 = vmatprep.subr.mxu0 0.0
      %420 = vmatpush1.msra.mxu0 1.0
      %421 = vmatprep.subr.mxu0 0.0
      %422 = vmatpush1.msra.mxu0 1.0
      %423 = vmatprep.subr.mxu0 0.0
      %424 = vmatpush1.msra.mxu0 1.0
      %425 = vmatprep.subr.mxu0 0.0
      %426 = vmatpush1.msra.mxu0 1.0
      %427 = vmatprep.subr.mxu0 0.0
      %428 = vmatpush1.msra.mxu0 1.0
      %429 = vmatprep.subr.mxu0 0.0
      %430 = vmatpush1.msra.mxu0 1.0
      %431 = vmatprep.subr.mxu0 0.0
      %432 = vmatpush1.msra.mxu0 1.0
      %433 = vmatprep.subr.mxu0 0.0
      %434 = vmatpush1.msra.mxu0 1.0
      %435 = vmatprep.subr.mxu0 0.0
      %436 = vmatpush1.msra.mxu0 1.0
      %437 = vmatprep.subr.mxu0 0.0
      %438 = vmatpush1.msra.mxu0 1.0
      %439 = vmatprep.subr.mxu0 0.0
      %440 = vmatpush1.msra.mxu0 1.0
      %441 = vmatprep.subr.mxu0 0.0
      %442 = vmatpush1.msra.mxu0 1.0
      %443 = vmatprep.subr.mxu0 0.0
      %444 = vmatpush1.msra.mxu0 1.0
      %445 = vmatprep.subr.mxu0 0.0
      %446 = vmatpush1.msra.mxu0 1.0
      %447 = vmatprep.subr.mxu0 0.0
      %448 = vmatpush1.msra.mxu0 1.0
      %449 = vmatprep.subr.mxu0 0.0
      %450 = vmatpush1.msra.mxu0 1.0
      %451 = vmatprep.subr.mxu0 0.0
      %452 = vmatpush1.msra.mxu0 1.0
      %453 = vmatprep.subr.mxu0 0.0
      %454 = vmatpush1.msra.mxu0 1.0
      %455 = vmatprep.subr.mxu0 0.0
      %456 = vmatpush1.msra.mxu0 1.0
      %457 = vmatprep.subr.mxu0 0.0
      %458 = vmatpush1.msra.mxu0 1.0
      %459 = vmatprep.subr.mxu0 0.0
      %460 = vmatpush1.msra.mxu0 1.0
      %461 = vmatprep.subr.mxu0 0.0
      %462 = vmatpush1.msra.mxu0 1.0
      %463 = vmatprep.subr.mxu0 0.0
      %464 = vmatpush1.msra.mxu0 1.0
      %465 = vmatprep.subr.mxu0 0.0
      %466 = vmatpush1.msra.mxu0 1.0
      %467 = vmatprep.subr.mxu0 0.0
      %468 = vmatpush1.msra.mxu0 1.0
      %469 = vmatprep.mubr.f32.mxu0 %v395
      %470 = vmatmul.mubr.f32.gmra.mrb[0].mxu0 %v393
      %v471 = vpop.f32.mrb[0].mxu0
      %v472 = vadd.f32 0.0, %v471
      %v473 = vpop.f32.mrb[0].mxu0
      %474 = vdwg.mxu0
      %v475 = vadd.f32 %v404, %v472
      %vm476 = vcmask 3072
      %477 = vst.msk [vmem:[%s230] sm:$0xf] %vm476, %v475
      %v478 = vld [vmem:[%s234] sm:$0xf]
      %v479 = vmul.f32 %v393, %v393
      %v480 = vmul.f32 %v395, %v395
      %481 = vmatprep.subr.mxu0 0.0
      %482 = vmatpush1.msra.mxu0 1.0
      %483 = vmatprep.subr.mxu0 0.0
      %484 = vmatpush1.msra.mxu0 1.0
      %485 = vmatprep.subr.mxu0 0.0
      %486 = vmatpush1.msra.mxu0 1.0
      %487 = vmatprep.subr.mxu0 0.0
      %488 = vmatpush1.msra.mxu0 1.0
      %489 = vmatprep.subr.mxu0 0.0
      %490 = vmatpush1.msra.mxu0 1.0
      %491 = vmatprep.subr.mxu0 0.0
      %492 = vmatpush1.msra.mxu0 1.0
      %493 = vmatprep.subr.mxu0 0.0
      %494 = vmatpush1.msra.mxu0 1.0
      %495 = vmatprep.subr.mxu0 0.0
      %496 = vmatpush1.msra.mxu0 1.0
      %497 = vmatprep.subr.mxu0 0.0
      %498 = vmatpush1.msra.mxu0 1.0
      %499 = vmatprep.subr.mxu0 0.0
      %500 = vmatpush1.msra.mxu0 1.0
      %501 = vmatprep.subr.mxu0 0.0
      %502 = vmatpush1.msra.mxu0 1.0
      %503 = vmatprep.subr.mxu0 0.0
      %504 = vmatpush1.msra.mxu0 1.0
      %505 = vmatprep.subr.mxu0 0.0
      %506 = vmatpush1.msra.mxu0 1.0
      %507 = vmatprep.subr.mxu0 0.0
      %508 = vmatpush1.msra.mxu0 1.0
      %509 = vmatprep.subr.mxu0 0.0
      %510 = vmatpush1.msra.mxu0 1.0
      %511 = vmatprep.subr.mxu0 0.0
      %512 = vmatpush1.msra.mxu0 1.0
      %513 = vmatprep.subr.mxu0 0.0
      %514 = vmatpush1.msra.mxu0 1.0
      %515 = vmatprep.subr.mxu0 0.0
      %516 = vmatpush1.msra.mxu0 1.0
      %517 = vmatprep.subr.mxu0 0.0
      %518 = vmatpush1.msra.mxu0 1.0
      %519 = vmatprep.subr.mxu0 0.0
      %520 = vmatpush1.msra.mxu0 1.0
      %521 = vmatprep.subr.mxu0 0.0
      %522 = vmatpush1.msra.mxu0 1.0
      %523 = vmatprep.subr.mxu0 0.0
      %524 = vmatpush1.msra.mxu0 1.0
      %525 = vmatprep.subr.mxu0 0.0
      %526 = vmatpush1.msra.mxu0 1.0
      %527 = vmatprep.subr.mxu0 0.0
      %528 = vmatpush1.msra.mxu0 1.0
      %529 = vmatprep.subr.mxu0 0.0
      %530 = vmatpush1.msra.mxu0 1.0
      %531 = vmatprep.subr.mxu0 0.0
      %532 = vmatpush1.msra.mxu0 1.0
      %533 = vmatprep.subr.mxu0 0.0
      %534 = vmatpush1.msra.mxu0 1.0
      %535 = vmatprep.subr.mxu0 0.0
      %536 = vmatpush1.msra.mxu0 1.0
      %537 = vmatprep.subr.mxu0 0.0
      %538 = vmatpush1.msra.mxu0 1.0
      %539 = vmatprep.subr.mxu0 0.0
      %540 = vmatpush1.msra.mxu0 1.0
      %541 = vmatprep.subr.mxu0 0.0
      %542 = vmatpush1.msra.mxu0 1.0
      %543 = vmatprep.subr.mxu0 0.0
      %544 = vmatpush1.msra.mxu0 1.0
      %545 = vmatprep.mubr.f32.mxu0 %v480
      %546 = vmatmul.mubr.f32.gmra.mrb[0].mxu0 %v479
      %v547 = vpop.f32.mrb[0].mxu0
      %v548 = vadd.f32 0.0, %v547
      %v549 = vpop.f32.mrb[0].mxu0
      %550 = vdwg.mxu0
      %v551 = vadd.f32 %v478, %v548
      %552 = vst.msk [vmem:[%s234] sm:$0xf] %vm476, %v551
      %p553 = scmp.lt.s32.totalorder %s20, 1
      %s554 = scalar_select %p553, %s20, 1
      %s555 = smul.addr %s554, 4
      %s556 = scalar_lea.vmem %s3, %s555
      %p557 = scmp.lt.s32.totalorder %s20, 1
      %s558 = scalar_select %p557, %s20, 1
      %s559 = smul.addr %s558, 4
      %s560 = scalar_lea.vmem %s4, %s559
      // Predicated region
      $region37: #{seqbottle_forward.3} parent=31 // pred_check
        %p561 = pneg %p116
      $region38: #{seqbottle_forward.3} parent=31 // pred_check_branch
        %563 = sbr.rel (%p561) target = $region40
      $region39: #{seqbottle_forward.3} parent=31 // pred_region
        _
      $region40: #{seqbottle_forward.3} parent=31 // pred_fallthru
        _
      // Predicated region
      $region41: #{seqbottle_forward.3} parent=31 // pred_check
        %p564 = pneg %p142
      $region42: #{seqbottle_forward.3} parent=31 // pred_check_branch
        %566 = sbr.rel (%p564) target = $region44
      $region43: #{seqbottle_forward.3} parent=31 // pred_region
        _
      $region44: #{seqbottle_forward.3} parent=31 // pred_fallthru
        _
    $region32: #{seqbottle_forward.3} parent=5 // pred_fallthru
      _
    %p567 = scmp.le.s32.totalorder 2, %s11
    // Predicated region
    $region45: #{seqbottle_forward.3} parent=5 // pred_check
      %p568 = pneg %p567
    $region46: #{seqbottle_forward.3} parent=5 // pred_check_branch
      %570 = sbr.rel (%p568) target = $region48
    $region47: #{seqbottle_forward.3} parent=5 // pred_region
      %s571 = ssub.s32 %s11, 2
      // Predicated region
      $region49: #{seqbottle_forward.3} parent=47 // pred_check
        %p572 = pneg %p122
      $region50: #{seqbottle_forward.3} parent=47 // pred_check_branch
        %574 = sbr.rel (%p572) target = $region52
      $region51: #{seqbottle_forward.3} parent=47 // pred_region
        %p575 = scmp.lt.s32.totalorder %s22, 1
        %s576 = scalar_select %p575, %s22, 1
        %s577 = smul.addr %s576, 4
        %s578 = scalar_lea.vmem %s3, %s577
      $region52: #{seqbottle_forward.3} parent=47 // pred_fallthru
        _
      // Predicated region
      $region53: #{seqbottle_forward.3} parent=47 // pred_check
        %p579 = pneg %p148
      $region54: #{seqbottle_forward.3} parent=47 // pred_check_branch
        %581 = sbr.rel (%p579) target = $region56
      $region55: #{seqbottle_forward.3} parent=47 // pred_region
        %p582 = scmp.lt.s32.totalorder %s22, 1
        %s583 = scalar_select %p582, %s22, 1
        %s584 = smul.addr %s583, 4
        %s585 = scalar_lea.vmem %s4, %s584
      $region56: #{seqbottle_forward.3} parent=47 // pred_fallthru
        _
    $region48: #{seqbottle_forward.3} parent=5 // pred_fallthru
      _
  $region6: #{seqbottle_forward.3} parent=0 // loop_footer
    %s15 = sadd.s32 1, %s11
  $region7: #{seqbottle_forward.3} parent=0 // loop_footer_branch
    %10 = sbr.rel target = $region3
  $region8: #{seqbottle_forward.3} parent=0 // loop_exit
    _

// kernel: seqbottle_forward.5
$region0: #{seqbottle_forward.5}
  #allocation0 [shape = 'u32[]', space=smem, size = 0x4, offset = 0x4, fixed_abs, tag = 'smem constant byte address 0x4 - core index']
  #allocation1 [shape = 'u32[144,128]{1,0:T(1,128)}', space=vmem, size = 0x12000, scoped, tag = 'internal scratch']
  %s0 = inlined_call_operand.vmem [shape: f32[2,4,256], index: 0, kind: input, shape index: {}]
  %s1 = inlined_call_operand.vmem [shape: f32[8,4], index: 1, kind: input, shape index: {}]
  %s2 = inlined_call_operand.vmem [shape: f32[4,8], index: 2, kind: input, shape index: {}]
  %s3 = inlined_call_operand.vmem [shape: f32[16,4], index: 3, kind: input, shape index: {}]
  %s4 = inlined_call_operand.vmem [shape: f32[16,1], index: 4, kind: input, shape index: {}]
  %s5 = inlined_call_operand.vmem [shape: f32[8,16], index: 5, kind: input, shape index: {}]
  %s6 = inlined_call_operand.vmem [shape: f32[8,1], index: 6, kind: input, shape index: {}]
  %s7 = inlined_call_operand.vmem [shape: f32[2,8,256], index: 7, kind: output, shape index: {}]
  %s8 = sld [smem:[#allocation0]]
  $region61: #{seqbottle_forward.5} parent=0
    _
  %s10 = ssub.s32 1, %s8
  %s11 = scalar_select 0, %s10, %s8
  loop: start=0, step=1, limit=4
  $region2: #{seqbottle_forward.5} parent=0 // loop_pre_header
    _
  $region3: #{seqbottle_forward.5} parent=0 // loop_header
    %s13 = sphi 0, %s17
    %p14 = scmp.ge.s32.totalorder %s13, 4
    %s20 = sphi 0, %s32
    %s21 = sphi 0, %s28
    %s22 = sphi 0, %s20
    %s23 = sphi 0, %s21
    %s24 = sphi 0, %s22
    %s25 = sphi 0, %s23
    %s37 = sphi 0, %s39
    %s40 = sphi 0, %s37
    %s41 = sphi 0, %s40
    %s57 = sphi 0, %s41
    %s61 = sphi 0, %s61
    %s63 = sphi 0, %s61
    %s64 = sphi 0, %s63
    %s78 = sphi 0, %s64
    %s82 = sphi 0, %s82
    %s84 = sphi 0, %s82
    %s85 = sphi 0, %s84
    %s99 = sphi 0, %s85
    %s103 = sphi 0, %s103
    %s105 = sphi 0, %s103
    %s106 = sphi 0, %s105
    %s120 = sphi 0, %s106
    %s124 = sphi 0, %s124
    %s126 = sphi 0, %s124
    %s127 = sphi 0, %s126
    %s141 = sphi 0, %s127
    %s145 = sphi 0, %s145
    %s147 = sphi 0, %s145
    %s148 = sphi 0, %s147
    %s162 = sphi 0, %s148
    %s166 = sphi 0, %s166
    %s168 = sphi 0, %s166
    %s169 = sphi 0, %s168
    %s183 = sphi 0, %s169
    %s191 = sphi 0, %s193
    %s194 = sphi 0, %s191
    %s195 = sphi 0, %s194
    %s211 = sphi 0, %s195
  $region4: #{seqbottle_forward.5} parent=0 // loop_header_branch
    %16 = sbr.rel (%p14) target = $region8
  $region5: #{seqbottle_forward.5} parent=0 // loop_body
    %s18 = ssub.s32 %s13, 1
    %s19 = ssub.s32 %s13, 2
    %s26 = sadd.s32 1, %s21
    %p27 = scmp.ge.s32.totalorder %s26, 1
    %s28 = scalar_select %p27, 0, %s26
    %s29 = sadd.s32 1, %s20
    %s30 = scalar_select %p27, %s29, %s20
    %p31 = scmp.ge.s32.totalorder %s30, 2
    %s32 = scalar_select %p31, 0, %s30
    %s33 = ssub.s32 %s20, %s32
    %s34 = ssub.s32 %s21, %s28
    %s35 = sor.u32 %s33, %s34
    %p36 = scmp.eq.s32.totalorder %s35, 0
    %s38 = sadd.s32 %s37, 1
    %s39 = scalar_select %p36, %s37, %s38
    %p42 = pneg %p36
    %p43 = scmp.eq.s32.totalorder %s13, 1
    %p44 = por %p42, %p43
    %p45 = scmp.ne.s32.totalorder %s37, %s40
    %p46 = scmp.eq.s32.totalorder %s13, 0
    %p47 = por %p45, %p46
    %p48 = scmp.ne.s32.totalorder %s37, %s40
    %p49 = scmp.eq.s32.totalorder %s18, 1
    %p50 = por %p48, %p49
    %p51 = scmp.ne.s32.totalorder %s40, %s41
    %p52 = scmp.eq.s32.totalorder %s18, 0
    %p53 = por %p51, %p52
    %p54 = scmp.ne.s32.totalorder %s40, %s41
    %p55 = scmp.eq.s32.totalorder %s19, 1
    %p56 = por %p54, %p55
    %p58 = scmp.ne.s32.totalorder %s41, %s57
    %p59 = scmp.eq.s32.totalorder %s19, 0
    %p60 = por %p58, %p59
    %s62 = sadd.s32 %s61, 1
    %p65 = scmp.eq.s32.totalorder %s13, 1
    %p66 = scmp.ne.s32.totalorder %s61, %s63
    %p67 = scmp.eq.s32.totalorder %s13, 0
    %p68 = por %p66, %p67
    %p69 = scmp.ne.s32.totalorder %s61, %s63
    %p70 = scmp.eq.s32.totalorder %s18, 1
    %p71 = por %p69, %p70
    %p72 = scmp.ne.s32.totalorder %s63, %s64
    %p73 = scmp.eq.s32.totalorder %s18, 0
    %p74 = por %p72, %p73
    %p75 = scmp.ne.s32.totalorder %s63, %s64
    %p76 = scmp.eq.s32.totalorder %s19, 1
    %p77 = por %p75, %p76
    %p79 = scmp.ne.s32.totalorder %s64, %s78
    %p80 = scmp.eq.s32.totalorder %s19, 0
    %p81 = por %p79, %p80
    %s83 = sadd.s32 %s82, 1
    %p86 = scmp.eq.s32.totalorder %s13, 1
    %p87 = scmp.ne.s32.totalorder %s82, %s84
    %p88 = scmp.eq.s32.totalorder %s13, 0
    %p89 = por %p87, %p88
    %p90 = scmp.ne.s32.totalorder %s82, %s84
    %p91 = scmp.eq.s32.totalorder %s18, 1
    %p92 = por %p90, %p91
    %p93 = scmp.ne.s32.totalorder %s84, %s85
    %p94 = scmp.eq.s32.totalorder %s18, 0
    %p95 = por %p93, %p94
    %p96 = scmp.ne.s32.totalorder %s84, %s85
    %p97 = scmp.eq.s32.totalorder %s19, 1
    %p98 = por %p96, %p97
    %p100 = scmp.ne.s32.totalorder %s85, %s99
    %p101 = scmp.eq.s32.totalorder %s19, 0
    %p102 = por %p100, %p101
    %s104 = sadd.s32 %s103, 1
    %p107 = scmp.eq.s32.totalorder %s13, 1
    %p108 = scmp.ne.s32.totalorder %s103, %s105
    %p109 = scmp.eq.s32.totalorder %s13, 0
    %p110 = por %p108, %p109
    %p111 = scmp.ne.s32.totalorder %s103, %s105
    %p112 = scmp.eq.s32.totalorder %s18, 1
    %p113 = por %p111, %p112
    %p114 = scmp.ne.s32.totalorder %s105, %s106
    %p115 = scmp.eq.s32.totalorder %s18, 0
    %p116 = por %p114, %p115
    %p117 = scmp.ne.s32.totalorder %s105, %s106
    %p118 = scmp.eq.s32.totalorder %s19, 1
    %p119 = por %p117, %p118
    %p121 = scmp.ne.s32.totalorder %s106, %s120
    %p122 = scmp.eq.s32.totalorder %s19, 0
    %p123 = por %p121, %p122
    %s125 = sadd.s32 %s124, 1
    %p128 = scmp.eq.s32.totalorder %s13, 1
    %p129 = scmp.ne.s32.totalorder %s124, %s126
    %p130 = scmp.eq.s32.totalorder %s13, 0
    %p131 = por %p129, %p130
    %p132 = scmp.ne.s32.totalorder %s124, %s126
    %p133 = scmp.eq.s32.totalorder %s18, 1
    %p134 = por %p132, %p133
    %p135 = scmp.ne.s32.totalorder %s126, %s127
    %p136 = scmp.eq.s32.totalorder %s18, 0
    %p137 = por %p135, %p136
    %p138 = scmp.ne.s32.totalorder %s126, %s127
    %p139 = scmp.eq.s32.totalorder %s19, 1
    %p140 = por %p138, %p139
    %p142 = scmp.ne.s32.totalorder %s127, %s141
    %p143 = scmp.eq.s32.totalorder %s19, 0
    %p144 = por %p142, %p143
    %s146 = sadd.s32 %s145, 1
    %p149 = scmp.eq.s32.totalorder %s13, 1
    %p150 = scmp.ne.s32.totalorder %s145, %s147
    %p151 = scmp.eq.s32.totalorder %s13, 0
    %p152 = por %p150, %p151
    %p153 = scmp.ne.s32.totalorder %s145, %s147
    %p154 = scmp.eq.s32.totalorder %s18, 1
    %p155 = por %p153, %p154
    %p156 = scmp.ne.s32.totalorder %s147, %s148
    %p157 = scmp.eq.s32.totalorder %s18, 0
    %p158 = por %p156, %p157
    %p159 = scmp.ne.s32.totalorder %s147, %s148
    %p160 = scmp.eq.s32.totalorder %s19, 1
    %p161 = por %p159, %p160
    %p163 = scmp.ne.s32.totalorder %s148, %s162
    %p164 = scmp.eq.s32.totalorder %s19, 0
    %p165 = por %p163, %p164
    %s167 = sadd.s32 %s166, 1
    %p170 = scmp.eq.s32.totalorder %s13, 1
    %p171 = scmp.ne.s32.totalorder %s166, %s168
    %p172 = scmp.eq.s32.totalorder %s13, 0
    %p173 = por %p171, %p172
    %p174 = scmp.ne.s32.totalorder %s166, %s168
    %p175 = scmp.eq.s32.totalorder %s18, 1
    %p176 = por %p174, %p175
    %p177 = scmp.ne.s32.totalorder %s168, %s169
    %p178 = scmp.eq.s32.totalorder %s18, 0
    %p179 = por %p177, %p178
    %p180 = scmp.ne.s32.totalorder %s168, %s169
    %p181 = scmp.eq.s32.totalorder %s19, 1
    %p182 = por %p180, %p181
    %p184 = scmp.ne.s32.totalorder %s169, %s183
    %p185 = scmp.eq.s32.totalorder %s19, 0
    %p186 = por %p184, %p185
    %s187 = ssub.s32 %s20, %s32
    %s188 = ssub.s32 %s21, %s28
    %s189 = sor.u32 %s187, %s188
    %p190 = scmp.eq.s32.totalorder %s189, 0
    %s192 = sadd.s32 %s191, 1
    %s193 = scalar_select %p190, %s191, %s192
    %p196 = pneg %p190
    %p197 = scmp.eq.s32.totalorder %s13, 1
    %p198 = por %p196, %p197
    %p199 = scmp.ne.s32.totalorder %s191, %s194
    %p200 = scmp.eq.s32.totalorder %s13, 0
    %p201 = por %p199, %p200
    %p202 = scmp.ne.s32.totalorder %s191, %s194
    %p203 = scmp.eq.s32.totalorder %s18, 1
    %p204 = por %p202, %p203
    %p205 = scmp.ne.s32.totalorder %s194, %s195
    %p206 = scmp.eq.s32.totalorder %s18, 0
    %p207 = por %p205, %p206
    %p208 = scmp.ne.s32.totalorder %s194, %s195
    %p209 = scmp.eq.s32.totalorder %s19, 1
    %p210 = por %p208, %p209
    %p212 = scmp.ne.s32.totalorder %s195, %s211
    %p213 = scmp.eq.s32.totalorder %s19, 0
    %p214 = por %p212, %p213
    %p215 = scmp.le.s32.totalorder 1, %s13
    %p216 = scmp.lt.s32.totalorder %s13, 3
    %p217 = pnand %p215, %p216
    %p218 = pneg %p217
    // Predicated region
    $region9: #{seqbottle_forward.5} parent=5 // pred_check
      _
    $region10: #{seqbottle_forward.5} parent=5 // pred_check_branch
      %220 = sbr.rel (%p217) target = $region12
    $region11: #{seqbottle_forward.5} parent=5 // pred_region
      %s221 = ssub.s32 %s13, 1
      // Predicated region
      $region13: #{seqbottle_forward.5} parent=11 // pred_check
        %p222 = pneg %p74
      $region14: #{seqbottle_forward.5} parent=11 // pred_check_branch
        %224 = sbr.rel (%p222) target = $region16
      $region15: #{seqbottle_forward.5} parent=11 // pred_region
        _
      $region16: #{seqbottle_forward.5} parent=11 // pred_fallthru
        _
      // Predicated region
      $region17: #{seqbottle_forward.5} parent=11 // pred_check
        %p225 = pneg %p95
      $region18: #{seqbottle_forward.5} parent=11 // pred_check_branch
        %227 = sbr.rel (%p225) target = $region20
      $region19: #{seqbottle_forward.5} parent=11 // pred_region
        _
      $region20: #{seqbottle_forward.5} parent=11 // pred_fallthru
        _
      // Predicated region
      $region21: #{seqbottle_forward.5} parent=11 // pred_check
        %p228 = pneg %p116
      $region22: #{seqbottle_forward.5} parent=11 // pred_check_branch
        %230 = sbr.rel (%p228) target = $region24
      $region23: #{seqbottle_forward.5} parent=11 // pred_region
        _
      $region24: #{seqbottle_forward.5} parent=11 // pred_fallthru
        _
      // Predicated region
      $region25: #{seqbottle_forward.5} parent=11 // pred_check
        %p231 = pneg %p137
      $region26: #{seqbottle_forward.5} parent=11 // pred_check_branch
        %233 = sbr.rel (%p231) target = $region28
      $region27: #{seqbottle_forward.5} parent=11 // pred_region
        _
      $region28: #{seqbottle_forward.5} parent=11 // pred_fallthru
        _
      // Predicated region
      $region29: #{seqbottle_forward.5} parent=11 // pred_check
        %p234 = pneg %p158
      $region30: #{seqbottle_forward.5} parent=11 // pred_check_branch
        %236 = sbr.rel (%p234) target = $region32
      $region31: #{seqbottle_forward.5} parent=11 // pred_region
        _
      $region32: #{seqbottle_forward.5} parent=11 // pred_fallthru
        _
      // Predicated region
      $region33: #{seqbottle_forward.5} parent=11 // pred_check
        %p237 = pneg %p179
      $region34: #{seqbottle_forward.5} parent=11 // pred_check_branch
        %239 = sbr.rel (%p237) target = $region36
      $region35: #{seqbottle_forward.5} parent=11 // pred_region
        _
      $region36: #{seqbottle_forward.5} parent=11 // pred_fallthru
        _
    $region12: #{seqbottle_forward.5} parent=5 // pred_fallthru
      _
    %p240 = scmp.lt.s32.totalorder %s13, 2
    // Predicated region
    $region37: #{seqbottle_forward.5} parent=5 // pred_check
      %p241 = pneg %p240
    $region38: #{seqbottle_forward.5} parent=5 // pred_check_branch
      %243 = sbr.rel (%p241) target = $region40
    $region39: #{seqbottle_forward.5} parent=5 // pred_region
      // Predicated region
      $region41: #{seqbottle_forward.5} parent=39 // pred_check
        %p244 = pneg %p47
      $region42: #{seqbottle_forward.5} parent=39 // pred_check_branch
        %246 = sbr.rel (%p244) target = $region44
      $region43: #{seqbottle_forward.5} parent=39 // pred_region
        %s247 = smul.u32 2, %s21
        %p248 = scmp.lt.s32.totalorder %s20, 1
        %s249 = scalar_select %p248, %s20, 1
        %p250 = scmp.lt.s32.totalorder %s247, 1
        %s251 = scalar_select %p250, %s247, 1
        %s252 = smul.addr %s249, 2
        %s253 = sadd.s32 %s251, %s252
        %s254 = smul.addr %s253, 4
        %s255 = scalar_lea.vmem %s0, %s254
        %s256 = smul.u32 2, %s21
      $region44: #{seqbottle_forward.5} parent=39 // pred_fallthru
        _
    $region40: #{seqbottle_forward.5} parent=5 // pred_fallthru
      _
    %p257 = scmp.le.s32.totalorder 1, %s13
    %p258 = scmp.lt.s32.totalorder %s13, 3
    %p259 = pnand %p257, %p258
    %p260 = pneg %p259
    // Predicated region
    $region45: #{seqbottle_forward.5} parent=5 // pred_check
      _
    $region46: #{seqbottle_forward.5} parent=5 // pred_check_branch
      %262 = sbr.rel (%p259) target = $region48
    $region47: #{seqbottle_forward.5} parent=5 // pred_region
      %s263 = ssub.s32 %s13, 1
      %s264 = smul.u32 2, %s23
      %p265 = scmp.lt.s32.totalorder %s22, 1
      %s266 = scalar_select %p265, %s22, 1
      %p267 = scmp.lt.s32.totalorder %s264, 1
      %s268 = scalar_select %p267, %s264, 1
      %s269 = smul.addr %s266, 2
      %s270 = sadd.s32 %s268, %s269
      %s271 = smul.addr %s270, 4
      %s272 = scalar_lea.vmem %s0, %s271
      %p273 = pneg %p53
      %p274 = pneg %p50
      %p275 = pneg %p74
      %p276 = pneg %p71
      %p277 = pneg %p95
      %p278 = pneg %p92
      %p279 = pneg %p116
      %p280 = pneg %p113
      %p281 = pneg %p137
      %p282 = pneg %p134
      %p283 = pneg %p158
      %p284 = pneg %p155
      %p285 = pneg %p179
      %p286 = pneg %p176
      %p287 = pneg %p207
      %p288 = pneg %p204
      %s289 = smul.u32 2, %s23
      %p290 = scmp.lt.s32.totalorder %s22, 1
      %s291 = scalar_select %p290, %s22, 1
      %p292 = scmp.lt.s32.totalorder %s289, 1
      %s293 = scalar_select %p292, %s289, 1
      %s294 = smul.addr %s291, 2
      %s295 = sadd.s32 %s293, %s294
      %s296 = smul.addr %s295, 8
      %s297 = scalar_lea.vmem %s7, %s296
      %s298 = smul.u32 2, %s23
      %p299 = scmp.lt.s32.totalorder %s22, 1
      %s300 = scalar_select %p299, %s22, 1
      %p301 = scmp.lt.s32.totalorder %s298, 1
      %s302 = scalar_select %p301, %s298, 1
      %s303 = smul.addr %s300, 2
      %s304 = sadd.s32 %s302, %s303
      %s305 = smul.addr %s304, 4
      %s306 = scalar_lea.vmem %s0, %s305
      %s307 = smul.u32 2, %s23
      %s308 = smul.u32 2, %s23
      %p309 = scmp.lt.s32.totalorder %s22, 1
      %s310 = scalar_select %p309, %s22, 1
      %p311 = scmp.lt.s32.totalorder %s308, 1
      %s312 = scalar_select %p311, %s308, 1
      %s313 = smul.addr %s310, 2
      %s314 = sadd.s32 %s312, %s313
      %s315 = smul.addr %s314, 8
      %s316 = scalar_lea.vmem %s7, %s315
      %s317 = smul.u32 2, %s23
      %v318 = vld [vmem:[%s306] sm:$0xff]
      %v319 = vld [vmem:[%s1] sm:$0xff]
      %v321 = vcombine.high %v318, %v318
      %vm322 = vcmask 31744
      %v324 = vsel %vm322, %v319, 0
      %vm326 = vcmask 1043456
      %v327 = vsel %vm326, %v318, 0
      %v329 = vsel %vm326, %v321, 0
      %331 = vmatprep.subr.mxu0 %v329
      %332 = vmatpush1.msra.mxu0 %v327
      %333 = vmatprep.subr.mxu0 0.0
      %334 = vmatpush1.msra.mxu0 0.0
      %335 = vmatprep.subr.mxu0 0.0
      %336 = vmatpush1.msra.mxu0 0.0
      %337 = vmatprep.subr.mxu0 0.0
      %338 = vmatpush1.msra.mxu0 0.0
      %339 = vmatprep.subr.mxu0 0.0
      %340 = vmatpush1.msra.mxu0 0.0
      %341 = vmatprep.subr.mxu0 0.0
      %342 = vmatpush1.msra.mxu0 0.0
      %343 = vmatprep.subr.mxu0 0.0
      %344 = vmatpush1.msra.mxu0 0.0
      %345 = vmatprep.subr.mxu0 0.0
      %346 = vmatpush1.msra.mxu0 0.0
      %347 = vmatprep.subr.mxu0 0.0
      %348 = vmatpush1.msra.mxu0 0.0
      %349 = vmatprep.subr.mxu0 0.0
      %350 = vmatpush1.msra.mxu0 0.0
      %351 = vmatprep.subr.mxu0 0.0
      %352 = vmatpush1.msra.mxu0 0.0
      %353 = vmatprep.subr.mxu0 0.0
      %354 = vmatpush1.msra.mxu0 0.0
      %355 = vmatprep.subr.mxu0 0.0
      %356 = vmatpush1.msra.mxu0 0.0
      %357 = vmatprep.subr.mxu0 0.0
      %358 = vmatpush1.msra.mxu0 0.0
      %359 = vmatprep.subr.mxu0 0.0
      %360 = vmatpush1.msra.mxu0 0.0
      %361 = vmatprep.subr.mxu0 0.0
      %362 = vmatpush1.msra.mxu0 0.0
      %363 = vmatprep.subr.mxu0 0.0
      %364 = vmatpush1.msra.mxu0 0.0
      %365 = vmatprep.subr.mxu0 0.0
      %366 = vmatpush1.msra.mxu0 0.0
      %367 = vmatprep.subr.mxu0 0.0
      %368 = vmatpush1.msra.mxu0 0.0
      %369 = vmatprep.subr.mxu0 0.0
      %370 = vmatpush1.msra.mxu0 0.0
      %371 = vmatprep.subr.mxu0 0.0
      %372 = vmatpush1.msra.mxu0 0.0
      %373 = vmatprep.subr.mxu0 0.0
      %374 = vmatpush1.msra.mxu0 0.0
      %375 = vmatprep.subr.mxu0 0.0
      %376 = vmatpush1.msra.mxu0 0.0
      %377 = vmatprep.subr.mxu0 0.0
      %378 = vmatpush1.msra.mxu0 0.0
      %379 = vmatprep.subr.mxu0 0.0
      %380 = vmatpush1.msra.mxu0 0.0
      %381 = vmatprep.subr.mxu0 0.0
      %382 = vmatpush1.msra.mxu0 0.0
      %383 = vmatprep.subr.mxu0 0.0
      %384 = vmatpush1.msra.mxu0 0.0
      %385 = vmatprep.subr.mxu0 0.0
      %386 = vmatpush1.msra.mxu0 0.0
      %387 = vmatprep.subr.mxu0 0.0
      %388 = vmatpush1.msra.mxu0 0.0
      %389 = vmatprep.subr.mxu0 0.0
      %390 = vmatpush1.msra.mxu0 0.0
      %391 = vmatprep.subr.mxu0 0.0
      %392 = vmatpush1.msra.mxu0 0.0
      %393 = vmatprep.subr.mxu0 0.0
      %394 = vmatpush1.msra.mxu0 0.0
      %395 = vmatprep.mubr.f32.mxu0 0.0
      %396 = vmatmul.mubr.f32.gmra.mrb[0].mxu0 %v324
      %v397 = vpop.f32.mrb[0].mxu0
      %v398 = vadd.f32 0.0, %v397
      %v399 = vpop.f32.mrb[0].mxu0
      %v400 = vadd.f32 0.0, %v399
      %401 = vdwg.mxu0
      %v402 = vmax.f32 %v398, 0.0
      %v403 = vmax.f32 %v400, 0.0
      %v404 = vld [vmem:[%s2] sm:$0xf]
      %vm405 = vcmask 64512
      %v407 = vsel %vm405, %v404, 0
      %409 = vmatprep.subr.mxu0 %v403
      %410 = vmatpush1.msra.mxu0 %v402
      %411 = vmatprep.subr.mxu0 0.0
      %412 = vmatpush1.msra.mxu0 0.0
      %413 = vmatprep.subr.mxu0 0.0
      %414 = vmatpush1.msra.mxu0 0.0
      %415 = vmatprep.subr.mxu0 0.0
      %416 = vmatpush1.msra.mxu0 0.0
      %417 = vmatprep.subr.mxu0 0.0
      %418 = vmatpush1.msra.mxu0 0.0
      %419 = vmatprep.subr.mxu0 0.0
      %420 = vmatpush1.msra.mxu0 0.0
      %421 = vmatprep.subr.mxu0 0.0
      %422 = vmatpush1.msra.mxu0 0.0
      %423 = vmatprep.subr.mxu0 0.0
      %424 = vmatpush1.msra.mxu0 0.0
      %425 = vmatprep.subr.mxu0 0.0
      %426 = vmatpush1.msra.mxu0 0.0
      %427 = vmatprep.subr.mxu0 0.0
      %428 = vmatpush1.msra.mxu0 0.0
      %429 = vmatprep.subr.mxu0 0.0
      %430 = vmatpush1.msra.mxu0 0.0
      %431 = vmatprep.subr.mxu0 0.0
      %432 = vmatpush1.msra.mxu0 0.0
      %433 = vmatprep.subr.mxu0 0.0
      %434 = vmatpush1.msra.mxu0 0.0
      %435 = vmatprep.subr.mxu0 0.0
      %436 = vmatpush1.msra.mxu0 0.0
      %437 = vmatprep.subr.mxu0 0.0
      %438 = vmatpush1.msra.mxu0 0.0
      %439 = vmatprep.subr.mxu0 0.0
      %440 = vmatpush1.msra.mxu0 0.0
      %441 = vmatprep.subr.mxu0 0.0
      %442 = vmatpush1.msra.mxu0 0.0
      %443 = vmatprep.subr.mxu0 0.0
      %444 = vmatpush1.msra.mxu0 0.0
      %445 = vmatprep.subr.mxu0 0.0
      %446 = vmatpush1.msra.mxu0 0.0
      %447 = vmatprep.subr.mxu0 0.0
      %448 = vmatpush1.msra.mxu0 0.0
      %449 = vmatprep.subr.mxu0 0.0
      %450 = vmatpush1.msra.mxu0 0.0
      %451 = vmatprep.subr.mxu0 0.0
      %452 = vmatpush1.msra.mxu0 0.0
      %453 = vmatprep.subr.mxu0 0.0
      %454 = vmatpush1.msra.mxu0 0.0
      %455 = vmatprep.subr.mxu0 0.0
      %456 = vmatpush1.msra.mxu0 0.0
      %457 = vmatprep.subr.mxu0 0.0
      %458 = vmatpush1.msra.mxu0 0.0
      %459 = vmatprep.subr.mxu0 0.0
      %460 = vmatpush1.msra.mxu0 0.0
      %461 = vmatprep.subr.mxu0 0.0
      %462 = vmatpush1.msra.mxu0 0.0
      %463 = vmatprep.subr.mxu0 0.0
      %464 = vmatpush1.msra.mxu0 0.0
      %465 = vmatprep.subr.mxu0 0.0
      %466 = vmatpush1.msra.mxu0 0.0
      %467 = vmatprep.subr.mxu0 0.0
      %468 = vmatpush1.msra.mxu0 0.0
      %469 = vmatprep.subr.mxu0 0.0
      %470 = vmatpush1.msra.mxu0 0.0
      %471 = vmatprep.subr.mxu0 0.0
      %472 = vmatpush1.msra.mxu0 0.0
      %473 = vmatprep.mubr.f32.mxu0 0.0
      %474 = vmatmul.mubr.f32.gmra.mrb[0].mxu0 %v407
      %v475 = vpop.f32.mrb[0].mxu0
      %v476 = vadd.f32 0.0, %v475
      %v477 = vpop.f32.mrb[0].mxu0
      %v478 = vadd.f32 0.0, %v477
      %479 = vdwg.mxu0
      %v480 = vld [vmem:[%s3] sm:$0xff]
      %v481 = vld [vmem:[%s3 + $0x8] sm:$0xff]
      %v482 = vld [vmem:[%s4] sm:$0xff]
      %v483 = vld [vmem:[%s4 + $0x8] sm:$0xff]
      %485 = vset.pattern.permute.xlu0 0
      %486 = vperm.xlu0 %485, %v482
      %v487 = vpop.permute.xlu0 %486
      %490 = vset.pattern.permute.xlu0 0
      %491 = vperm.xlu0 %490, %v483
      %v492 = vpop.permute.xlu0 %491
      %v495 = vsel %vm322, %v480, 0
      %v498 = vsel %vm322, %v481, 0
      %v501 = vsel %vm326, %v476, 0
      %v504 = vsel %vm326, %v478, 0
      %506 = vmatprep.subr.mxu0 %v504
      %507 = vmatpush1.msra.mxu0 %v501
      %508 = vmatprep.subr.mxu0 0.0
      %509 = vmatpush1.msra.mxu0 0.0
      %510 = vmatprep.subr.mxu0 0.0
      %511 = vmatpush1.msra.mxu0 0.0
      %512 = vmatprep.subr.mxu0 0.0
      %513 = vmatpush1.msra.mxu0 0.0
      %514 = vmatprep.subr.mxu0 0.0
      %515 = vmatpush1.msra.mxu0 0.0
      %516 = vmatprep.subr.mxu0 0.0
      %517 = vmatpush1.msra.mxu0 0.0
      %518 = vmatprep.subr.mxu0 0.0
      %519 = vmatpush1.msra.mxu0 0.0
      %520 = vmatprep.subr.mxu0 0.0
      %521 = vmatpush1.msra.mxu0 0.0
      %522 = vmatprep.subr.mxu0 0.0
      %523 = vmatpush1.msra.mxu0 0.0
      %524 = vmatprep.subr.mxu0 0.0
      %525 = vmatpush1.msra.mxu0 0.0
      %526 = vmatprep.subr.mxu0 0.0
      %527 = vmatpush1.msra.mxu0 0.0
      %528 = vmatprep.subr.mxu0 0.0
      %529 = vmatpush1.msra.mxu0 0.0
      %530 = vmatprep.subr.mxu0 0.0
      %531 = vmatpush1.msra.mxu0 0.0
      %532 = vmatprep.subr.mxu0 0.0
      %533 = vmatpush1.msra.mxu0 0.0
      %534 = vmatprep.subr.mxu0 0.0
      %535 = vmatpush1.msra.mxu0 0.0
      %536 = vmatprep.subr.mxu0 0.0
      %537 = vmatpush1.msra.mxu0 0.0
      %538 = vmatprep.subr.mxu0 0.0
      %539 = vmatpush1.msra.mxu0 0.0
      %540 = vmatprep.subr.mxu0 0.0
      %541 = vmatpush1.msra.mxu0 0.0
      %542 = vmatprep.subr.mxu0 0.0
      %543 = vmatpush1.msra.mxu0 0.0
      %544 = vmatprep.subr.mxu0 0.0
      %545 = vmatpush1.msra.mxu0 0.0
      %546 = vmatprep.subr.mxu0 0.0
      %547 = vmatpush1.msra.mxu0 0.0
      %548 = vmatprep.subr.mxu0 0.0
      %549 = vmatpush1.msra.mxu0 0.0
      %550 = vmatprep.subr.mxu0 0.0
      %551 = vmatpush1.msra.mxu0 0.0
      %552 = vmatprep.subr.mxu0 0.0
      %553 = vmatpush1.msra.mxu0 0.0
      %554 = vmatprep.subr.mxu0 0.0
      %555 = vmatpush1.msra.mxu0 0.0
      %556 = vmatprep.subr.mxu0 0.0
      %557 = vmatpush1.msra.mxu0 0.0
      %558 = vmatprep.subr.mxu0 0.0
      %559 = vmatpush1.msra.mxu0 0.0
      %560 = vmatprep.subr.mxu0 0.0
      %561 = vmatpush1.msra.mxu0 0.0
      %562 = vmatprep.subr.mxu0 0.0
      %563 = vmatpush1.msra.mxu0 0.0
      %564 = vmatprep.subr.mxu0 0.0
      %565 = vmatpush1.msra.mxu0 0.0
      %566 = vmatprep.subr.mxu0 0.0
      %567 = vmatpush1.msra.mxu0 0.0
      %568 = vmatprep.subr.mxu0 0.0
      %569 = vmatpush1.msra.mxu0 0.0
      %570 = vmatprep.mubr.f32.mxu0 0.0
      %571 = vmatmul.mubr.f32.gmra.mrb[0].mxu0 %v495
      %v572 = vpop.f32.mrb[0].mxu0
      %v573 = vadd.f32 %v487, %v572
      %v574 = vpop.f32.mrb[0].mxu0
      %v575 = vadd.f32 %v487, %v574
      %576 = vmatprep.mubr.f32.mxu0 0.0
      %577 = vmatmul.mubr.f32.gmra.mrb[0].mxu0 %v498
      %v578 = vpop.f32.mrb[0].mxu0
      %v579 = vadd.f32 %v492, %v578
      %v580 = vpop.f32.mrb[0].mxu0
      %v581 = vadd.f32 %v492, %v580
      %582 = vdwg.mxu0
      %v583 = vmax.f32 %v573, 0.0
      %v584 = vmax.f32 %v575, 0.0
      %v585 = vmax.f32 %v579, 0.0
      %v586 = vmax.f32 %v581, 0.0
      %v587 = vld [vmem:[%s5] sm:$0xff]
      %v588 = vld [vmem:[%s6] sm:$0xff]
      %590 = vset.pattern.permute.xlu0 0
      %591 = vperm.xlu0 %590, %v588
      %v592 = vpop.permute.xlu0 %591
      %vm594 = vcmask 130048
      %v596 = vsel %vm594, %v587, 0
      %598 = vmatprep.subr.mxu0 %v584
      %599 = vmatpush1.msra.mxu0 %v583
      %600 = vmatprep.subr.mxu0 %v586
      %601 = vmatpush1.msra.mxu0 %v585
      %602 = vmatprep.subr.mxu0 0.0
      %603 = vmatpush1.msra.mxu0 0.0
      %604 = vmatprep.subr.mxu0 0.0
      %605 = vmatpush1.msra.mxu0 0.0
      %606 = vmatprep.subr.mxu0 0.0
      %607 = vmatpush1.msra.mxu0 0.0
      %608 = vmatprep.subr.mxu0 0.0
      %609 = vmatpush1.msra.mxu0 0.0
      %610 = vmatprep.subr.mxu0 0.0
      %611 = vmatpush1.msra.mxu0 0.0
      %612 = vmatprep.subr.mxu0 0.0
      %613 = vmatpush1.msra.mxu0 0.0
      %614 = vmatprep.subr.mxu0 0.0
      %615 = vmatpush1.msra.mxu0 0.0
      %616 = vmatprep.subr.mxu0 0.0
      %617 = vmatpush1.msra.mxu0 0.0
      %618 = vmatprep.subr.mxu0 0.0
      %619 = vmatpush1.msra.mxu0 0.0
      %620 = vmatprep.subr.mxu0 0.0
      %621 = vmatpush1.msra.mxu0 0.0
      %622 = vmatprep.subr.mxu0 0.0
      %623 = vmatpush1.msra.mxu0 0.0
      %624 = vmatprep.subr.mxu0 0.0
      %625 = vmatpush1.msra.mxu0 0.0
      %626 = vmatprep.subr.mxu0 0.0
      %627 = vmatpush1.msra.mxu0 0.0
      %628 = vmatprep.subr.mxu0 0.0
      %629 = vmatpush1.msra.mxu0 0.0
      %630 = vmatprep.subr.mxu0 0.0
      %631 = vmatpush1.msra.mxu0 0.0
      %632 = vmatprep.subr.mxu0 0.0
      %633 = vmatpush1.msra.mxu0 0.0
      %634 = vmatprep.subr.mxu0 0.0
      %635 = vmatpush1.msra.mxu0 0.0
      %636 = vmatprep.subr.mxu0 0.0
      %637 = vmatpush1.msra.mxu0 0.0
      %638 = vmatprep.subr.mxu0 0.0
      %639 = vmatpush1.msra.mxu0 0.0
      %640 = vmatprep.subr.mxu0 0.0
      %641 = vmatpush1.msra.mxu0 0.0
      %642 = vmatprep.subr.mxu0 0.0
      %643 = vmatpush1.msra.mxu0 0.0
      %644 = vmatprep.subr.mxu0 0.0
      %645 = vmatpush1.msra.mxu0 0.0
      %646 = vmatprep.subr.mxu0 0.0
      %647 = vmatpush1.msra.mxu0 0.0
      %648 = vmatprep.subr.mxu0 0.0
      %649 = vmatpush1.msra.mxu0 0.0
      %650 = vmatprep.subr.mxu0 0.0
      %651 = vmatpush1.msra.mxu0 0.0
      %652 = vmatprep.subr.mxu0 0.0
      %653 = vmatpush1.msra.mxu0 0.0
      %654 = vmatprep.subr.mxu0 0.0
      %655 = vmatpush1.msra.mxu0 0.0
      %656 = vmatprep.subr.mxu0 0.0
      %657 = vmatpush1.msra.mxu0 0.0
      %658 = vmatprep.subr.mxu0 0.0
      %659 = vmatpush1.msra.mxu0 0.0
      %660 = vmatprep.subr.mxu0 0.0
      %661 = vmatpush1.msra.mxu0 0.0
      %662 = vmatprep.mubr.f32.mxu0 0.0
      %663 = vmatmul.mubr.f32.gmra.mrb[0].mxu0 %v596
      %v664 = vpop.f32.mrb[0].mxu0
      %v665 = vadd.f32 %v592, %v664
      %v666 = vpop.f32.mrb[0].mxu0
      %v667 = vadd.f32 %v592, %v666
      %668 = vdwg.mxu0
      %669 = vst [vmem:[%s316] sm:$0xff] %v665
      %670 = vst [vmem:[%s316 + $0x8] sm:$0xff] %v667
      %s671 = smul.u32 2, %s23
      %p672 = scmp.lt.s32.totalorder %s22, 1
      %s673 = scalar_select %p672, %s22, 1
      %p674 = scmp.lt.s32.totalorder %s671, 1
      %s675 = scalar_select %p674, %s671, 1
      %s676 = smul.addr %s673, 2
      %s677 = sadd.s32 %s675, %s676
      %s678 = smul.addr %s677, 8
      %s679 = scalar_lea.vmem %s7, %s678
      // Predicated region
      $region49: #{seqbottle_forward.5} parent=47 // pred_check
        %p680 = pneg %p204
      $region50: #{seqbottle_forward.5} parent=47 // pred_check_branch
        %682 = sbr.rel (%p680) target = $region52
      $region51: #{seqbottle_forward.5} parent=47 // pred_region
        %s683 = smul.u32 2, %s23
      $region52: #{seqbottle_forward.5} parent=47 // pred_fallthru
        _
    $region48: #{seqbottle_forward.5} parent=5 // pred_fallthru
      _
    %p684 = scmp.le.s32.totalorder 2, %s13
    // Predicated region
    $region53: #{seqbottle_forward.5} parent=5 // pred_check
      %p685 = pneg %p684
    $region54: #{seqbottle_forward.5} parent=5 // pred_check_branch
      %687 = sbr.rel (%p685) target = $region56
    $region55: #{seqbottle_forward.5} parent=5 // pred_region
      %s688 = ssub.s32 %s13, 2
      // Predicated region
      $region57: #{seqbottle_forward.5} parent=55 // pred_check
        %p689 = pneg %p210
      $region58: #{seqbottle_forward.5} parent=55 // pred_check_branch
        %691 = sbr.rel (%p689) target = $region60
      $region59: #{seqbottle_forward.5} parent=55 // pred_region
        %s692 = smul.u32 2, %s25
        %p693 = scmp.lt.s32.totalorder %s24, 1
        %s694 = scalar_select %p693, %s24, 1
        %p695 = scmp.lt.s32.totalorder %s692, 1
        %s696 = scalar_select %p695, %s692, 1
        %s697 = smul.addr %s694, 2
        %s698 = sadd.s32 %s696, %s697
        %s699 = smul.addr %s698, 8
        %s700 = scalar_lea.vmem %s7, %s699
      $region60: #{seqbottle_forward.5} parent=55 // pred_fallthru
        _
    $region56: #{seqbottle_forward.5} parent=5 // pred_fallthru
      _
  $region6: #{seqbottle_forward.5} parent=0 // loop_footer
    %s17 = sadd.s32 1, %s13
  $region7: #{seqbottle_forward.5} parent=0 // loop_footer_branch
    %12 = sbr.rel target = $region3
  $region8: #{seqbottle_forward.5} parent=0 // loop_exit
    _

// kernel: seqbottle_forward.4
$region0: #{seqbottle_forward.4}
  #allocation0 [shape = 'u32[]', space=smem, size = 0x4, offset = 0x4, fixed_abs, tag = 'smem constant byte address 0x4 - core index']
  #allocation1 [shape = 'u32[144,128]{1,0:T(1,128)}', space=vmem, size = 0x12000, scoped, tag = 'internal scratch']
  %s0 = inlined_call_operand.vmem [shape: f32[2,4,256], index: 0, kind: input, shape index: {}]
  %s1 = inlined_call_operand.vmem [shape: f32[8,4], index: 1, kind: input, shape index: {}]
  %s2 = inlined_call_operand.vmem [shape: f32[4,8], index: 2, kind: input, shape index: {}]
  %s3 = inlined_call_operand.vmem [shape: f32[16,4], index: 3, kind: input, shape index: {}]
  %s4 = inlined_call_operand.vmem [shape: f32[16,1], index: 4, kind: input, shape index: {}]
  %s5 = inlined_call_operand.vmem [shape: f32[8,16], index: 5, kind: input, shape index: {}]
  %s6 = inlined_call_operand.vmem [shape: f32[2,8,1], index: 6, kind: output, shape index: {0}]
  %s7 = inlined_call_operand.vmem [shape: f32[2,8,1], index: 7, kind: output, shape index: {1}]
  %8 = xla_tuple %s6, %s7
  %s9 = sld [smem:[#allocation0]]
  $region69: #{seqbottle_forward.4} parent=0
    _
  %s11 = ssub.s32 1, %s9
  %s12 = scalar_select 0, %s11, %s9
  loop: start=0, step=1, limit=4
  $region2: #{seqbottle_forward.4} parent=0 // loop_pre_header
    _
  $region3: #{seqbottle_forward.4} parent=0 // loop_header
    %s14 = sphi 0, %s18
    %p15 = scmp.ge.s32.totalorder %s14, 4
    %s21 = sphi 0, %s33
    %s22 = sphi 0, %s29
    %s23 = sphi 0, %s21
    %s24 = sphi 0, %s22
    %s25 = sphi 0, %s23
    %s26 = sphi 0, %s24
    %s38 = sphi 0, %s40
    %s41 = sphi 0, %s38
    %s42 = sphi 0, %s41
    %s58 = sphi 0, %s42
    %s62 = sphi 0, %s62
    %s64 = sphi 0, %s62
    %s65 = sphi 0, %s64
    %s79 = sphi 0, %s65
    %s83 = sphi 0, %s83
    %s85 = sphi 0, %s83
    %s86 = sphi 0, %s85
    %s100 = sphi 0, %s86
    %s104 = sphi 0, %s104
    %s106 = sphi 0, %s104
    %s107 = sphi 0, %s106
    %s121 = sphi 0, %s107
    %s125 = sphi 0, %s125
    %s127 = sphi 0, %s125
    %s128 = sphi 0, %s127
    %s142 = sphi 0, %s128
    %s146 = sphi 0, %s146
    %s148 = sphi 0, %s146
    %s149 = sphi 0, %s148
    %s163 = sphi 0, %s149
    %s169 = sphi 0, %s171
    %s172 = sphi 0, %s169
    %s173 = sphi 0, %s172
    %s189 = sphi 0, %s173
    %s195 = sphi 0, %s197
    %s198 = sphi 0, %s195
    %s199 = sphi 0, %s198
    %s215 = sphi 0, %s199
  $region4: #{seqbottle_forward.4} parent=0 // loop_header_branch
    %17 = sbr.rel (%p15) target = $region8
  $region5: #{seqbottle_forward.4} parent=0 // loop_body
    %s19 = ssub.s32 %s14, 1
    %s20 = ssub.s32 %s14, 2
    %s27 = sadd.s32 1, %s22
    %p28 = scmp.ge.s32.totalorder %s27, 1
    %s29 = scalar_select %p28, 0, %s27
    %s30 = sadd.s32 1, %s21
    %s31 = scalar_select %p28, %s30, %s21
    %p32 = scmp.ge.s32.totalorder %s31, 2
    %s33 = scalar_select %p32, 0, %s31
    %s34 = ssub.s32 %s21, %s33
    %s35 = ssub.s32 %s22, %s29
    %s36 = sor.u32 %s34, %s35
    %p37 = scmp.eq.s32.totalorder %s36, 0
    %s39 = sadd.s32 %s38, 1
    %s40 = scalar_select %p37, %s38, %s39
    %p43 = pneg %p37
    %p44 = scmp.eq.s32.totalorder %s14, 1
    %p45 = por %p43, %p44
    %p46 = scmp.ne.s32.totalorder %s38, %s41
    %p47 = scmp.eq.s32.totalorder %s14, 0
    %p48 = por %p46, %p47
    %p49 = scmp.ne.s32.totalorder %s38, %s41
    %p50 = scmp.eq.s32.totalorder %s19, 1
    %p51 = por %p49, %p50
    %p52 = scmp.ne.s32.totalorder %s41, %s42
    %p53 = scmp.eq.s32.totalorder %s19, 0
    %p54 = por %p52, %p53
    %p55 = scmp.ne.s32.totalorder %s41, %s42
    %p56 = scmp.eq.s32.totalorder %s20, 1
    %p57 = por %p55, %p56
    %p59 = scmp.ne.s32.totalorder %s42, %s58
    %p60 = scmp.eq.s32.totalorder %s20, 0
    %p61 = por %p59, %p60
    %s63 = sadd.s32 %s62, 1
    %p66 = scmp.eq.s32.totalorder %s14, 1
    %p67 = scmp.ne.s32.totalorder %s62, %s64
    %p68 = scmp.eq.s32.totalorder %s14, 0
    %p69 = por %p67, %p68
    %p70 = scmp.ne.s32.totalorder %s62, %s64
    %p71 = scmp.eq.s32.totalorder %s19, 1
    %p72 = por %p70, %p71
    %p73 = scmp.ne.s32.totalorder %s64, %s65
    %p74 = scmp.eq.s32.totalorder %s19, 0
    %p75 = por %p73, %p74
    %p76 = scmp.ne.s32.totalorder %s64, %s65
    %p77 = scmp.eq.s32.totalorder %s20, 1
    %p78 = por %p76, %p77
    %p80 = scmp.ne.s32.totalorder %s65, %s79
    %p81 = scmp.eq.s32.totalorder %s20, 0
    %p82 = por %p80, %p81
    %s84 = sadd.s32 %s83, 1
    %p87 = scmp.eq.s32.totalorder %s14, 1
    %p88 = scmp.ne.s32.totalorder %s83, %s85
    %p89 = scmp.eq.s32.totalorder %s14, 0
    %p90 = por %p88, %p89
    %p91 = scmp.ne.s32.totalorder %s83, %s85
    %p92 = scmp.eq.s32.totalorder %s19, 1
    %p93 = por %p91, %p92
    %p94 = scmp.ne.s32.totalorder %s85, %s86
    %p95 = scmp.eq.s32.totalorder %s19, 0
    %p96 = por %p94, %p95
    %p97 = scmp.ne.s32.totalorder %s85, %s86
    %p98 = scmp.eq.s32.totalorder %s20, 1
    %p99 = por %p97, %p98
    %p101 = scmp.ne.s32.totalorder %s86, %s100
    %p102 = scmp.eq.s32.totalorder %s20, 0
    %p103 = por %p101, %p102
    %s105 = sadd.s32 %s104, 1
    %p108 = scmp.eq.s32.totalorder %s14, 1
    %p109 = scmp.ne.s32.totalorder %s104, %s106
    %p110 = scmp.eq.s32.totalorder %s14, 0
    %p111 = por %p109, %p110
    %p112 = scmp.ne.s32.totalorder %s104, %s106
    %p113 = scmp.eq.s32.totalorder %s19, 1
    %p114 = por %p112, %p113
    %p115 = scmp.ne.s32.totalorder %s106, %s107
    %p116 = scmp.eq.s32.totalorder %s19, 0
    %p117 = por %p115, %p116
    %p118 = scmp.ne.s32.totalorder %s106, %s107
    %p119 = scmp.eq.s32.totalorder %s20, 1
    %p120 = por %p118, %p119
    %p122 = scmp.ne.s32.totalorder %s107, %s121
    %p123 = scmp.eq.s32.totalorder %s20, 0
    %p124 = por %p122, %p123
    %s126 = sadd.s32 %s125, 1
    %p129 = scmp.eq.s32.totalorder %s14, 1
    %p130 = scmp.ne.s32.totalorder %s125, %s127
    %p131 = scmp.eq.s32.totalorder %s14, 0
    %p132 = por %p130, %p131
    %p133 = scmp.ne.s32.totalorder %s125, %s127
    %p134 = scmp.eq.s32.totalorder %s19, 1
    %p135 = por %p133, %p134
    %p136 = scmp.ne.s32.totalorder %s127, %s128
    %p137 = scmp.eq.s32.totalorder %s19, 0
    %p138 = por %p136, %p137
    %p139 = scmp.ne.s32.totalorder %s127, %s128
    %p140 = scmp.eq.s32.totalorder %s20, 1
    %p141 = por %p139, %p140
    %p143 = scmp.ne.s32.totalorder %s128, %s142
    %p144 = scmp.eq.s32.totalorder %s20, 0
    %p145 = por %p143, %p144
    %s147 = sadd.s32 %s146, 1
    %p150 = scmp.eq.s32.totalorder %s14, 1
    %p151 = scmp.ne.s32.totalorder %s146, %s148
    %p152 = scmp.eq.s32.totalorder %s14, 0
    %p153 = por %p151, %p152
    %p154 = scmp.ne.s32.totalorder %s146, %s148
    %p155 = scmp.eq.s32.totalorder %s19, 1
    %p156 = por %p154, %p155
    %p157 = scmp.ne.s32.totalorder %s148, %s149
    %p158 = scmp.eq.s32.totalorder %s19, 0
    %p159 = por %p157, %p158
    %p160 = scmp.ne.s32.totalorder %s148, %s149
    %p161 = scmp.eq.s32.totalorder %s20, 1
    %p162 = por %p160, %p161
    %p164 = scmp.ne.s32.totalorder %s149, %s163
    %p165 = scmp.eq.s32.totalorder %s20, 0
    %p166 = por %p164, %p165
    %s167 = ssub.s32 %s21, %s33
    %p168 = scmp.eq.s32.totalorder %s167, 0
    %s170 = sadd.s32 %s169, 1
    %s171 = scalar_select %p168, %s169, %s170
    %p174 = pneg %p168
    %p175 = scmp.eq.s32.totalorder %s14, 1
    %p176 = por %p174, %p175
    %p177 = scmp.ne.s32.totalorder %s169, %s172
    %p178 = scmp.eq.s32.totalorder %s14, 0
    %p179 = por %p177, %p178
    %p180 = scmp.ne.s32.totalorder %s169, %s172
    %p181 = scmp.eq.s32.totalorder %s19, 1
    %p182 = por %p180, %p181
    %p183 = scmp.ne.s32.totalorder %s172, %s173
    %p184 = scmp.eq.s32.totalorder %s19, 0
    %p185 = por %p183, %p184
    %p186 = scmp.ne.s32.totalorder %s172, %s173
    %p187 = scmp.eq.s32.totalorder %s20, 1
    %p188 = por %p186, %p187
    %p190 = scmp.ne.s32.totalorder %s173, %s189
    %p191 = scmp.eq.s32.totalorder %s20, 0
    %p192 = por %p190, %p191
    %s193 = ssub.s32 %s21, %s33
    %p194 = scmp.eq.s32.totalorder %s193, 0
    %s196 = sadd.s32 %s195, 1
    %s197 = scalar_select %p194, %s195, %s196
    %p200 = pneg %p194
    %p201 = scmp.eq.s32.totalorder %s14, 1
    %p202 = por %p200, %p201
    %p203 = scmp.ne.s32.totalorder %s195, %s198
    %p204 = scmp.eq.s32.totalorder %s14, 0
    %p205 = por %p203, %p204
    %p206 = scmp.ne.s32.totalorder %s195, %s198
    %p207 = scmp.eq.s32.totalorder %s19, 1
    %p208 = por %p206, %p207
    %p209 = scmp.ne.s32.totalorder %s198, %s199
    %p210 = scmp.eq.s32.totalorder %s19, 0
    %p211 = por %p209, %p210
    %p212 = scmp.ne.s32.totalorder %s198, %s199
    %p213 = scmp.eq.s32.totalorder %s20, 1
    %p214 = por %p212, %p213
    %p216 = scmp.ne.s32.totalorder %s199, %s215
    %p217 = scmp.eq.s32.totalorder %s20, 0
    %p218 = por %p216, %p217
    %p219 = scmp.le.s32.totalorder 1, %s14
    %p220 = scmp.lt.s32.totalorder %s14, 3
    %p221 = pnand %p219, %p220
    %p222 = pneg %p221
    // Predicated region
    $region9: #{seqbottle_forward.4} parent=5 // pred_check
      _
    $region10: #{seqbottle_forward.4} parent=5 // pred_check_branch
      %224 = sbr.rel (%p221) target = $region12
    $region11: #{seqbottle_forward.4} parent=5 // pred_region
      %s225 = ssub.s32 %s14, 1
      // Predicated region
      $region13: #{seqbottle_forward.4} parent=11 // pred_check
        %p226 = pneg %p75
      $region14: #{seqbottle_forward.4} parent=11 // pred_check_branch
        %228 = sbr.rel (%p226) target = $region16
      $region15: #{seqbottle_forward.4} parent=11 // pred_region
        _
      $region16: #{seqbottle_forward.4} parent=11 // pred_fallthru
        _
      // Predicated region
      $region17: #{seqbottle_forward.4} parent=11 // pred_check
        %p229 = pneg %p96
      $region18: #{seqbottle_forward.4} parent=11 // pred_check_branch
        %231 = sbr.rel (%p229) target = $region20
      $region19: #{seqbottle_forward.4} parent=11 // pred_region
        _
      $region20: #{seqbottle_forward.4} parent=11 // pred_fallthru
        _
      // Predicated region
      $region21: #{seqbottle_forward.4} parent=11 // pred_check
        %p232 = pneg %p117
      $region22: #{seqbottle_forward.4} parent=11 // pred_check_branch
        %234 = sbr.rel (%p232) target = $region24
      $region23: #{seqbottle_forward.4} parent=11 // pred_region
        _
      $region24: #{seqbottle_forward.4} parent=11 // pred_fallthru
        _
      // Predicated region
      $region25: #{seqbottle_forward.4} parent=11 // pred_check
        %p235 = pneg %p138
      $region26: #{seqbottle_forward.4} parent=11 // pred_check_branch
        %237 = sbr.rel (%p235) target = $region28
      $region27: #{seqbottle_forward.4} parent=11 // pred_region
        _
      $region28: #{seqbottle_forward.4} parent=11 // pred_fallthru
        _
      // Predicated region
      $region29: #{seqbottle_forward.4} parent=11 // pred_check
        %p238 = pneg %p159
      $region30: #{seqbottle_forward.4} parent=11 // pred_check_branch
        %240 = sbr.rel (%p238) target = $region32
      $region31: #{seqbottle_forward.4} parent=11 // pred_region
        _
      $region32: #{seqbottle_forward.4} parent=11 // pred_fallthru
        _
    $region12: #{seqbottle_forward.4} parent=5 // pred_fallthru
      _
    %p241 = scmp.lt.s32.totalorder %s14, 2
    // Predicated region
    $region33: #{seqbottle_forward.4} parent=5 // pred_check
      %p242 = pneg %p241
    $region34: #{seqbottle_forward.4} parent=5 // pred_check_branch
      %244 = sbr.rel (%p242) target = $region36
    $region35: #{seqbottle_forward.4} parent=5 // pred_region
      // Predicated region
      $region37: #{seqbottle_forward.4} parent=35 // pred_check
        %p245 = pneg %p48
      $region38: #{seqbottle_forward.4} parent=35 // pred_check_branch
        %247 = sbr.rel (%p245) target = $region40
      $region39: #{seqbottle_forward.4} parent=35 // pred_region
        %s248 = smul.u32 2, %s22
        %p249 = scmp.lt.s32.totalorder %s21, 1
        %s250 = scalar_select %p249, %s21, 1
        %p251 = scmp.lt.s32.totalorder %s248, 1
        %s252 = scalar_select %p251, %s248, 1
        %s253 = smul.addr %s250, 2
        %s254 = sadd.s32 %s252, %s253
        %s255 = smul.addr %s254, 4
        %s256 = scalar_lea.vmem %s0, %s255
        %s257 = smul.u32 2, %s22
      $region40: #{seqbottle_forward.4} parent=35 // pred_fallthru
        _
    $region36: #{seqbottle_forward.4} parent=5 // pred_fallthru
      _
    %p258 = scmp.le.s32.totalorder 1, %s14
    %p259 = scmp.lt.s32.totalorder %s14, 3
    %p260 = pnand %p258, %p259
    %p261 = pneg %p260
    // Predicated region
    $region41: #{seqbottle_forward.4} parent=5 // pred_check
      _
    $region42: #{seqbottle_forward.4} parent=5 // pred_check_branch
      %263 = sbr.rel (%p260) target = $region44
    $region43: #{seqbottle_forward.4} parent=5 // pred_region
      %s264 = ssub.s32 %s14, 1
      %s265 = smul.u32 2, %s24
      %p266 = scmp.lt.s32.totalorder %s23, 1
      %s267 = scalar_select %p266, %s23, 1
      %p268 = scmp.lt.s32.totalorder %s265, 1
      %s269 = scalar_select %p268, %s265, 1
      %s270 = smul.addr %s267, 2
      %s271 = sadd.s32 %s269, %s270
      %s272 = smul.addr %s271, 4
      %s273 = scalar_lea.vmem %s0, %s272
      %p274 = pneg %p54
      %p275 = pneg %p51
      %p276 = pneg %p75
      %p277 = pneg %p72
      %p278 = pneg %p96
      %p279 = pneg %p93
      %p280 = pneg %p117
      %p281 = pneg %p114
      %p282 = pneg %p138
      %p283 = pneg %p135
      %p284 = pneg %p159
      %p285 = pneg %p156
      %p286 = pneg %p185
      %p287 = pneg %p182
      %p288 = scmp.lt.s32.totalorder %s23, 1
      %s289 = scalar_select %p288, %s23, 1
      %s290 = smul.addr %s289, 8
      %s291 = scalar_lea.vmem %s6, %s290
      %p292 = pneg %p211
      %p293 = pneg %p208
      %p294 = scmp.lt.s32.totalorder %s23, 1
      %s295 = scalar_select %p294, %s23, 1
      %s296 = smul.addr %s295, 8
      %s297 = scalar_lea.vmem %s7, %s296
      %s298 = smul.u32 2, %s24
      %p299 = scmp.lt.s32.totalorder %s23, 1
      %s300 = scalar_select %p299, %s23, 1
      %p301 = scmp.lt.s32.totalorder %s298, 1
      %s302 = scalar_select %p301, %s298, 1
      %s303 = smul.addr %s300, 2
      %s304 = sadd.s32 %s302, %s303
      %s305 = smul.addr %s304, 4
      %s306 = scalar_lea.vmem %s0, %s305
      %s307 = smul.u32 2, %s24
      %p308 = scmp.lt.s32.totalorder %s23, 1
      %s309 = scalar_select %p308, %s23, 1
      %s310 = smul.addr %s309, 8
      %s311 = scalar_lea.vmem %s6, %s310
      %p312 = scmp.lt.s32.totalorder %s23, 1
      %s313 = scalar_select %p312, %s23, 1
      %s314 = smul.addr %s313, 8
      %s315 = scalar_lea.vmem %s7, %s314
      %v316 = vld [vmem:[%s306] sm:$0xff]
      %v317 = vld [vmem:[%s1] sm:$0xff]
      %v319 = vcombine.high %v316, %v316
      %vm320 = vcmask 31744
      %v322 = vsel %vm320, %v317, 0
      %vm324 = vcmask 1043456
      %v325 = vsel %vm324, %v316, 0
      %v327 = vsel %vm324, %v319, 0
      %329 = vmatprep.subr.mxu0 %v327
      %330 = vmatpush1.msra.mxu0 %v325
      %331 = vmatprep.subr.mxu0 0.0
      %332 = vmatpush1.msra.mxu0 0.0
      %333 = vmatprep.subr.mxu0 0.0
      %334 = vmatpush1.msra.mxu0 0.0
      %335 = vmatprep.subr.mxu0 0.0
      %336 = vmatpush1.msra.mxu0 0.0
      %337 = vmatprep.subr.mxu0 0.0
      %338 = vmatpush1.msra.mxu0 0.0
      %339 = vmatprep.subr.mxu0 0.0
      %340 = vmatpush1.msra.mxu0 0.0
      %341 = vmatprep.subr.mxu0 0.0
      %342 = vmatpush1.msra.mxu0 0.0
      %343 = vmatprep.subr.mxu0 0.0
      %344 = vmatpush1.msra.mxu0 0.0
      %345 = vmatprep.subr.mxu0 0.0
      %346 = vmatpush1.msra.mxu0 0.0
      %347 = vmatprep.subr.mxu0 0.0
      %348 = vmatpush1.msra.mxu0 0.0
      %349 = vmatprep.subr.mxu0 0.0
      %350 = vmatpush1.msra.mxu0 0.0
      %351 = vmatprep.subr.mxu0 0.0
      %352 = vmatpush1.msra.mxu0 0.0
      %353 = vmatprep.subr.mxu0 0.0
      %354 = vmatpush1.msra.mxu0 0.0
      %355 = vmatprep.subr.mxu0 0.0
      %356 = vmatpush1.msra.mxu0 0.0
      %357 = vmatprep.subr.mxu0 0.0
      %358 = vmatpush1.msra.mxu0 0.0
      %359 = vmatprep.subr.mxu0 0.0
      %360 = vmatpush1.msra.mxu0 0.0
      %361 = vmatprep.subr.mxu0 0.0
      %362 = vmatpush1.msra.mxu0 0.0
      %363 = vmatprep.subr.mxu0 0.0
      %364 = vmatpush1.msra.mxu0 0.0
      %365 = vmatprep.subr.mxu0 0.0
      %366 = vmatpush1.msra.mxu0 0.0
      %367 = vmatprep.subr.mxu0 0.0
      %368 = vmatpush1.msra.mxu0 0.0
      %369 = vmatprep.subr.mxu0 0.0
      %370 = vmatpush1.msra.mxu0 0.0
      %371 = vmatprep.subr.mxu0 0.0
      %372 = vmatpush1.msra.mxu0 0.0
      %373 = vmatprep.subr.mxu0 0.0
      %374 = vmatpush1.msra.mxu0 0.0
      %375 = vmatprep.subr.mxu0 0.0
      %376 = vmatpush1.msra.mxu0 0.0
      %377 = vmatprep.subr.mxu0 0.0
      %378 = vmatpush1.msra.mxu0 0.0
      %379 = vmatprep.subr.mxu0 0.0
      %380 = vmatpush1.msra.mxu0 0.0
      %381 = vmatprep.subr.mxu0 0.0
      %382 = vmatpush1.msra.mxu0 0.0
      %383 = vmatprep.subr.mxu0 0.0
      %384 = vmatpush1.msra.mxu0 0.0
      %385 = vmatprep.subr.mxu0 0.0
      %386 = vmatpush1.msra.mxu0 0.0
      %387 = vmatprep.subr.mxu0 0.0
      %388 = vmatpush1.msra.mxu0 0.0
      %389 = vmatprep.subr.mxu0 0.0
      %390 = vmatpush1.msra.mxu0 0.0
      %391 = vmatprep.subr.mxu0 0.0
      %392 = vmatpush1.msra.mxu0 0.0
      %393 = vmatprep.mubr.f32.mxu0 0.0
      %394 = vmatmul.mubr.f32.gmra.mrb[0].mxu0 %v322
      %v395 = vpop.f32.mrb[0].mxu0
      %v396 = vadd.f32 0.0, %v395
      %v397 = vpop.f32.mrb[0].mxu0
      %v398 = vadd.f32 0.0, %v397
      %399 = vdwg.mxu0
      %v400 = vmax.f32 %v396, 0.0
      %v401 = vmax.f32 %v398, 0.0
      %v402 = vld [vmem:[%s2] sm:$0xf]
      %vm403 = vcmask 64512
      %v405 = vsel %vm403, %v402, 0
      %407 = vmatprep.subr.mxu0 %v401
      %408 = vmatpush1.msra.mxu0 %v400
      %409 = vmatprep.subr.mxu0 0.0
      %410 = vmatpush1.msra.mxu0 0.0
      %411 = vmatprep.subr.mxu0 0.0
      %412 = vmatpush1.msra.mxu0 0.0
      %413 = vmatprep.subr.mxu0 0.0
      %414 = vmatpush1.msra.mxu0 0.0
      %415 = vmatprep.subr.mxu0 0.0
      %416 = vmatpush1.msra.mxu0 0.0
      %417 = vmatprep.subr.mxu0 0.0
      %418 = vmatpush1.msra.mxu0 0.0
      %419 = vmatprep.subr.mxu0 0.0
      %420 = vmatpush1.msra.mxu0 0.0
      %421 = vmatprep.subr.mxu0 0.0
      %422 = vmatpush1.msra.mxu0 0.0
      %423 = vmatprep.subr.mxu0 0.0
      %424 = vmatpush1.msra.mxu0 0.0
      %425 = vmatprep.subr.mxu0 0.0
      %426 = vmatpush1.msra.mxu0 0.0
      %427 = vmatprep.subr.mxu0 0.0
      %428 = vmatpush1.msra.mxu0 0.0
      %429 = vmatprep.subr.mxu0 0.0
      %430 = vmatpush1.msra.mxu0 0.0
      %431 = vmatprep.subr.mxu0 0.0
      %432 = vmatpush1.msra.mxu0 0.0
      %433 = vmatprep.subr.mxu0 0.0
      %434 = vmatpush1.msra.mxu0 0.0
      %435 = vmatprep.subr.mxu0 0.0
      %436 = vmatpush1.msra.mxu0 0.0
      %437 = vmatprep.subr.mxu0 0.0
      %438 = vmatpush1.msra.mxu0 0.0
      %439 = vmatprep.subr.mxu0 0.0
      %440 = vmatpush1.msra.mxu0 0.0
      %441 = vmatprep.subr.mxu0 0.0
      %442 = vmatpush1.msra.mxu0 0.0
      %443 = vmatprep.subr.mxu0 0.0
      %444 = vmatpush1.msra.mxu0 0.0
      %445 = vmatprep.subr.mxu0 0.0
      %446 = vmatpush1.msra.mxu0 0.0
      %447 = vmatprep.subr.mxu0 0.0
      %448 = vmatpush1.msra.mxu0 0.0
      %449 = vmatprep.subr.mxu0 0.0
      %450 = vmatpush1.msra.mxu0 0.0
      %451 = vmatprep.subr.mxu0 0.0
      %452 = vmatpush1.msra.mxu0 0.0
      %453 = vmatprep.subr.mxu0 0.0
      %454 = vmatpush1.msra.mxu0 0.0
      %455 = vmatprep.subr.mxu0 0.0
      %456 = vmatpush1.msra.mxu0 0.0
      %457 = vmatprep.subr.mxu0 0.0
      %458 = vmatpush1.msra.mxu0 0.0
      %459 = vmatprep.subr.mxu0 0.0
      %460 = vmatpush1.msra.mxu0 0.0
      %461 = vmatprep.subr.mxu0 0.0
      %462 = vmatpush1.msra.mxu0 0.0
      %463 = vmatprep.subr.mxu0 0.0
      %464 = vmatpush1.msra.mxu0 0.0
      %465 = vmatprep.subr.mxu0 0.0
      %466 = vmatpush1.msra.mxu0 0.0
      %467 = vmatprep.subr.mxu0 0.0
      %468 = vmatpush1.msra.mxu0 0.0
      %469 = vmatprep.subr.mxu0 0.0
      %470 = vmatpush1.msra.mxu0 0.0
      %471 = vmatprep.mubr.f32.mxu0 0.0
      %472 = vmatmul.mubr.f32.gmra.mrb[0].mxu0 %v405
      %v473 = vpop.f32.mrb[0].mxu0
      %v474 = vadd.f32 0.0, %v473
      %v475 = vpop.f32.mrb[0].mxu0
      %v476 = vadd.f32 0.0, %v475
      %477 = vdwg.mxu0
      %v478 = vld [vmem:[%s3] sm:$0xff]
      %v479 = vld [vmem:[%s3 + $0x8] sm:$0xff]
      %v480 = vld [vmem:[%s4] sm:$0xff]
      %v481 = vld [vmem:[%s4 + $0x8] sm:$0xff]
      %483 = vset.pattern.permute.xlu0 0
      %484 = vperm.xlu0 %483, %v480
      %v485 = vpop.permute.xlu0 %484
      %488 = vset.pattern.permute.xlu0 0
      %489 = vperm.xlu0 %488, %v481
      %v490 = vpop.permute.xlu0 %489
      %v493 = vsel %vm320, %v478, 0
      %v496 = vsel %vm320, %v479, 0
      %v499 = vsel %vm324, %v474, 0
      %v502 = vsel %vm324, %v476, 0
      %504 = vmatprep.subr.mxu0 %v502
      %505 = vmatpush1.msra.mxu0 %v499
      %506 = vmatprep.subr.mxu0 0.0
      %507 = vmatpush1.msra.mxu0 0.0
      %508 = vmatprep.subr.mxu0 0.0
      %509 = vmatpush1.msra.mxu0 0.0
      %510 = vmatprep.subr.mxu0 0.0
      %511 = vmatpush1.msra.mxu0 0.0
      %512 = vmatprep.subr.mxu0 0.0
      %513 = vmatpush1.msra.mxu0 0.0
      %514 = vmatprep.subr.mxu0 0.0
      %515 = vmatpush1.msra.mxu0 0.0
      %516 = vmatprep.subr.mxu0 0.0
      %517 = vmatpush1.msra.mxu0 0.0
      %518 = vmatprep.subr.mxu0 0.0
      %519 = vmatpush1.msra.mxu0 0.0
      %520 = vmatprep.subr.mxu0 0.0
      %521 = vmatpush1.msra.mxu0 0.0
      %522 = vmatprep.subr.mxu0 0.0
      %523 = vmatpush1.msra.mxu0 0.0
      %524 = vmatprep.subr.mxu0 0.0
      %525 = vmatpush1.msra.mxu0 0.0
      %526 = vmatprep.subr.mxu0 0.0
      %527 = vmatpush1.msra.mxu0 0.0
      %528 = vmatprep.subr.mxu0 0.0
      %529 = vmatpush1.msra.mxu0 0.0
      %530 = vmatprep.subr.mxu0 0.0
      %531 = vmatpush1.msra.mxu0 0.0
      %532 = vmatprep.subr.mxu0 0.0
      %533 = vmatpush1.msra.mxu0 0.0
      %534 = vmatprep.subr.mxu0 0.0
      %535 = vmatpush1.msra.mxu0 0.0
      %536 = vmatprep.subr.mxu0 0.0
      %537 = vmatpush1.msra.mxu0 0.0
      %538 = vmatprep.subr.mxu0 0.0
      %539 = vmatpush1.msra.mxu0 0.0
      %540 = vmatprep.subr.mxu0 0.0
      %541 = vmatpush1.msra.mxu0 0.0
      %542 = vmatprep.subr.mxu0 0.0
      %543 = vmatpush1.msra.mxu0 0.0
      %544 = vmatprep.subr.mxu0 0.0
      %545 = vmatpush1.msra.mxu0 0.0
      %546 = vmatprep.subr.mxu0 0.0
      %547 = vmatpush1.msra.mxu0 0.0
      %548 = vmatprep.subr.mxu0 0.0
      %549 = vmatpush1.msra.mxu0 0.0
      %550 = vmatprep.subr.mxu0 0.0
      %551 = vmatpush1.msra.mxu0 0.0
      %552 = vmatprep.subr.mxu0 0.0
      %553 = vmatpush1.msra.mxu0 0.0
      %554 = vmatprep.subr.mxu0 0.0
      %555 = vmatpush1.msra.mxu0 0.0
      %556 = vmatprep.subr.mxu0 0.0
      %557 = vmatpush1.msra.mxu0 0.0
      %558 = vmatprep.subr.mxu0 0.0
      %559 = vmatpush1.msra.mxu0 0.0
      %560 = vmatprep.subr.mxu0 0.0
      %561 = vmatpush1.msra.mxu0 0.0
      %562 = vmatprep.subr.mxu0 0.0
      %563 = vmatpush1.msra.mxu0 0.0
      %564 = vmatprep.subr.mxu0 0.0
      %565 = vmatpush1.msra.mxu0 0.0
      %566 = vmatprep.subr.mxu0 0.0
      %567 = vmatpush1.msra.mxu0 0.0
      %568 = vmatprep.mubr.f32.mxu0 0.0
      %569 = vmatmul.mubr.f32.gmra.mrb[0].mxu0 %v493
      %v570 = vpop.f32.mrb[0].mxu0
      %v571 = vadd.f32 %v485, %v570
      %v572 = vpop.f32.mrb[0].mxu0
      %v573 = vadd.f32 %v485, %v572
      %574 = vmatprep.mubr.f32.mxu0 0.0
      %575 = vmatmul.mubr.f32.gmra.mrb[0].mxu0 %v496
      %v576 = vpop.f32.mrb[0].mxu0
      %v577 = vadd.f32 %v490, %v576
      %v578 = vpop.f32.mrb[0].mxu0
      %v579 = vadd.f32 %v490, %v578
      %580 = vdwg.mxu0
      %v581 = vmax.f32 %v571, 0.0
      %v582 = vmax.f32 %v573, 0.0
      %v583 = vmax.f32 %v577, 0.0
      %v584 = vmax.f32 %v579, 0.0
      %v585 = vld [vmem:[%s5] sm:$0xff]
      %vm586 = vcmask 130048
      %v588 = vsel %vm586, %v585, 0
      %590 = vmatprep.subr.mxu0 %v582
      %591 = vmatpush1.msra.mxu0 %v581
      %592 = vmatprep.subr.mxu0 %v584
      %593 = vmatpush1.msra.mxu0 %v583
      %594 = vmatprep.subr.mxu0 0.0
      %595 = vmatpush1.msra.mxu0 0.0
      %596 = vmatprep.subr.mxu0 0.0
      %597 = vmatpush1.msra.mxu0 0.0
      %598 = vmatprep.subr.mxu0 0.0
      %599 = vmatpush1.msra.mxu0 0.0
      %600 = vmatprep.subr.mxu0 0.0
      %601 = vmatpush1.msra.mxu0 0.0
      %602 = vmatprep.subr.mxu0 0.0
      %603 = vmatpush1.msra.mxu0 0.0
      %604 = vmatprep.subr.mxu0 0.0
      %605 = vmatpush1.msra.mxu0 0.0
      %606 = vmatprep.subr.mxu0 0.0
      %607 = vmatpush1.msra.mxu0 0.0
      %608 = vmatprep.subr.mxu0 0.0
      %609 = vmatpush1.msra.mxu0 0.0
      %610 = vmatprep.subr.mxu0 0.0
      %611 = vmatpush1.msra.mxu0 0.0
      %612 = vmatprep.subr.mxu0 0.0
      %613 = vmatpush1.msra.mxu0 0.0
      %614 = vmatprep.subr.mxu0 0.0
      %615 = vmatpush1.msra.mxu0 0.0
      %616 = vmatprep.subr.mxu0 0.0
      %617 = vmatpush1.msra.mxu0 0.0
      %618 = vmatprep.subr.mxu0 0.0
      %619 = vmatpush1.msra.mxu0 0.0
      %620 = vmatprep.subr.mxu0 0.0
      %621 = vmatpush1.msra.mxu0 0.0
      %622 = vmatprep.subr.mxu0 0.0
      %623 = vmatpush1.msra.mxu0 0.0
      %624 = vmatprep.subr.mxu0 0.0
      %625 = vmatpush1.msra.mxu0 0.0
      %626 = vmatprep.subr.mxu0 0.0
      %627 = vmatpush1.msra.mxu0 0.0
      %628 = vmatprep.subr.mxu0 0.0
      %629 = vmatpush1.msra.mxu0 0.0
      %630 = vmatprep.subr.mxu0 0.0
      %631 = vmatpush1.msra.mxu0 0.0
      %632 = vmatprep.subr.mxu0 0.0
      %633 = vmatpush1.msra.mxu0 0.0
      %634 = vmatprep.subr.mxu0 0.0
      %635 = vmatpush1.msra.mxu0 0.0
      %636 = vmatprep.subr.mxu0 0.0
      %637 = vmatpush1.msra.mxu0 0.0
      %638 = vmatprep.subr.mxu0 0.0
      %639 = vmatpush1.msra.mxu0 0.0
      %640 = vmatprep.subr.mxu0 0.0
      %641 = vmatpush1.msra.mxu0 0.0
      %642 = vmatprep.subr.mxu0 0.0
      %643 = vmatpush1.msra.mxu0 0.0
      %644 = vmatprep.subr.mxu0 0.0
      %645 = vmatpush1.msra.mxu0 0.0
      %646 = vmatprep.subr.mxu0 0.0
      %647 = vmatpush1.msra.mxu0 0.0
      %648 = vmatprep.subr.mxu0 0.0
      %649 = vmatpush1.msra.mxu0 0.0
      %650 = vmatprep.subr.mxu0 0.0
      %651 = vmatpush1.msra.mxu0 0.0
      %652 = vmatprep.subr.mxu0 0.0
      %653 = vmatpush1.msra.mxu0 0.0
      %654 = vmatprep.mubr.f32.mxu0 0.0
      %655 = vmatmul.mubr.f32.gmra.mrb[0].mxu0 %v588
      %v656 = vpop.f32.mrb[0].mxu0
      %v657 = vadd.f32 0.0, %v656
      %v658 = vpop.f32.mrb[0].mxu0
      %v659 = vadd.f32 0.0, %v658
      %660 = vdwg.mxu0
      %p661 = scmp.eq.s32.totalorder %s24, 0
      // Predicated region
      $region45: #{seqbottle_forward.4} parent=43 // pred_check
        %p662 = pneg %p661
      $region46: #{seqbottle_forward.4} parent=43 // pred_check_branch
        %664 = sbr.rel (%p662) target = $region48
      $region47: #{seqbottle_forward.4} parent=43 // pred_region
        %vm665 = vcmask 7168
        %666 = vst.msk [vmem:[%s311] sm:$0xff] %vm665, 0.0
        %667 = vst.msk [vmem:[%s315] sm:$0xff] %vm665, 0.0
      $region48: #{seqbottle_forward.4} parent=43 // pred_fallthru
        _
      %v668 = vld [vmem:[%s311] sm:$0xff]
      %669 = vmatprep.subr.mxu0 0.0
      %670 = vmatpush1.msra.mxu0 1.0
      %671 = vmatprep.subr.mxu0 0.0
      %672 = vmatpush1.msra.mxu0 1.0
      %673 = vmatprep.subr.mxu0 0.0
      %674 = vmatpush1.msra.mxu0 1.0
      %675 = vmatprep.subr.mxu0 0.0
      %676 = vmatpush1.msra.mxu0 1.0
      %677 = vmatprep.subr.mxu0 0.0
      %678 = vmatpush1.msra.mxu0 1.0
      %679 = vmatprep.subr.mxu0 0.0
      %680 = vmatpush1.msra.mxu0 1.0
      %681 = vmatprep.subr.mxu0 0.0
      %682 = vmatpush1.msra.mxu0 1.0
      %683 = vmatprep.subr.mxu0 0.0
      %684 = vmatpush1.msra.mxu0 1.0
      %685 = vmatprep.subr.mxu0 0.0
      %686 = vmatpush1.msra.mxu0 1.0
      %687 = vmatprep.subr.mxu0 0.0
      %688 = vmatpush1.msra.mxu0 1.0
      %689 = vmatprep.subr.mxu0 0.0
      %690 = vmatpush1.msra.mxu0 1.0
      %691 = vmatprep.subr.mxu0 0.0
      %692 = vmatpush1.msra.mxu0 1.0
      %693 = vmatprep.subr.mxu0 0.0
      %694 = vmatpush1.msra.mxu0 1.0
      %695 = vmatprep.subr.mxu0 0.0
      %696 = vmatpush1.msra.mxu0 1.0
      %697 = vmatprep.subr.mxu0 0.0
      %698 = vmatpush1.msra.mxu0 1.0
      %699 = vmatprep.subr.mxu0 0.0
      %700 = vmatpush1.msra.mxu0 1.0
      %701 = vmatprep.subr.mxu0 0.0
      %702 = vmatpush1.msra.mxu0 1.0
      %703 = vmatprep.subr.mxu0 0.0
      %704 = vmatpush1.msra.mxu0 1.0
      %705 = vmatprep.subr.mxu0 0.0
      %706 = vmatpush1.msra.mxu0 1.0
      %707 = vmatprep.subr.mxu0 0.0
      %708 = vmatpush1.msra.mxu0 1.0
      %709 = vmatprep.subr.mxu0 0.0
      %710 = vmatpush1.msra.mxu0 1.0
      %711 = vmatprep.subr.mxu0 0.0
      %712 = vmatpush1.msra.mxu0 1.0
      %713 = vmatprep.subr.mxu0 0.0
      %714 = vmatpush1.msra.mxu0 1.0
      %715 = vmatprep.subr.mxu0 0.0
      %716 = vmatpush1.msra.mxu0 1.0
      %717 = vmatprep.subr.mxu0 0.0
      %718 = vmatpush1.msra.mxu0 1.0
      %719 = vmatprep.subr.mxu0 0.0
      %720 = vmatpush1.msra.mxu0 1.0
      %721 = vmatprep.subr.mxu0 0.0
      %722 = vmatpush1.msra.mxu0 1.0
      %723 = vmatprep.subr.mxu0 0.0
      %724 = vmatpush1.msra.mxu0 1.0
      %725 = vmatprep.subr.mxu0 0.0
      %726 = vmatpush1.msra.mxu0 1.0
      %727 = vmatprep.subr.mxu0 0.0
      %728 = vmatpush1.msra.mxu0 1.0
      %729 = vmatprep.subr.mxu0 0.0
      %730 = vmatpush1.msra.mxu0 1.0
      %731 = vmatprep.subr.mxu0 0.0
      %732 = vmatpush1.msra.mxu0 1.0
      %733 = vmatprep.mubr.f32.mxu0 %v659
      %734 = vmatmul.mubr.f32.gmra.mrb[0].mxu0 %v657
      %v735 = vpop.f32.mrb[0].mxu0
      %v736 = vadd.f32 0.0, %v735
      %v737 = vpop.f32.mrb[0].mxu0
      %738 = vdwg.mxu0
      %v739 = vadd.f32 %v668, %v736
      %vm740 = vcmask 7168
      %741 = vst.msk [vmem:[%s311] sm:$0xff] %vm740, %v739
      %v742 = vld [vmem:[%s315] sm:$0xff]
      %v743 = vmul.f32 %v657, %v657
      %v744 = vmul.f32 %v659, %v659
      %745 = vmatprep.subr.mxu0 0.0
      %746 = vmatpush1.msra.mxu0 1.0
      %747 = vmatprep.subr.mxu0 0.0
      %748 = vmatpush1.msra.mxu0 1.0
      %749 = vmatprep.subr.mxu0 0.0
      %750 = vmatpush1.msra.mxu0 1.0
      %751 = vmatprep.subr.mxu0 0.0
      %752 = vmatpush1.msra.mxu0 1.0
      %753 = vmatprep.subr.mxu0 0.0
      %754 = vmatpush1.msra.mxu0 1.0
      %755 = vmatprep.subr.mxu0 0.0
      %756 = vmatpush1.msra.mxu0 1.0
      %757 = vmatprep.subr.mxu0 0.0
      %758 = vmatpush1.msra.mxu0 1.0
      %759 = vmatprep.subr.mxu0 0.0
      %760 = vmatpush1.msra.mxu0 1.0
      %761 = vmatprep.subr.mxu0 0.0
      %762 = vmatpush1.msra.mxu0 1.0
      %763 = vmatprep.subr.mxu0 0.0
      %764 = vmatpush1.msra.mxu0 1.0
      %765 = vmatprep.subr.mxu0 0.0
      %766 = vmatpush1.msra.mxu0 1.0
      %767 = vmatprep.subr.mxu0 0.0
      %768 = vmatpush1.msra.mxu0 1.0
      %769 = vmatprep.subr.mxu0 0.0
      %770 = vmatpush1.msra.mxu0 1.0
      %771 = vmatprep.subr.mxu0 0.0
      %772 = vmatpush1.msra.mxu0 1.0
      %773 = vmatprep.subr.mxu0 0.0
      %774 = vmatpush1.msra.mxu0 1.0
      %775 = vmatprep.subr.mxu0 0.0
      %776 = vmatpush1.msra.mxu0 1.0
      %777 = vmatprep.subr.mxu0 0.0
      %778 = vmatpush1.msra.mxu0 1.0
      %779 = vmatprep.subr.mxu0 0.0
      %780 = vmatpush1.msra.mxu0 1.0
      %781 = vmatprep.subr.mxu0 0.0
      %782 = vmatpush1.msra.mxu0 1.0
      %783 = vmatprep.subr.mxu0 0.0
      %784 = vmatpush1.msra.mxu0 1.0
      %785 = vmatprep.subr.mxu0 0.0
      %786 = vmatpush1.msra.mxu0 1.0
      %787 = vmatprep.subr.mxu0 0.0
      %788 = vmatpush1.msra.mxu0 1.0
      %789 = vmatprep.subr.mxu0 0.0
      %790 = vmatpush1.msra.mxu0 1.0
      %791 = vmatprep.subr.mxu0 0.0
      %792 = vmatpush1.msra.mxu0 1.0
      %793 = vmatprep.subr.mxu0 0.0
      %794 = vmatpush1.msra.mxu0 1.0
      %795 = vmatprep.subr.mxu0 0.0
      %796 = vmatpush1.msra.mxu0 1.0
      %797 = vmatprep.subr.mxu0 0.0
      %798 = vmatpush1.msra.mxu0 1.0
      %799 = vmatprep.subr.mxu0 0.0
      %800 = vmatpush1.msra.mxu0 1.0
      %801 = vmatprep.subr.mxu0 0.0
      %802 = vmatpush1.msra.mxu0 1.0
      %803 = vmatprep.subr.mxu0 0.0
      %804 = vmatpush1.msra.mxu0 1.0
      %805 = vmatprep.subr.mxu0 0.0
      %806 = vmatpush1.msra.mxu0 1.0
      %807 = vmatprep.subr.mxu0 0.0
      %808 = vmatpush1.msra.mxu0 1.0
      %809 = vmatprep.mubr.f32.mxu0 %v744
      %810 = vmatmul.mubr.f32.gmra.mrb[0].mxu0 %v743
      %v811 = vpop.f32.mrb[0].mxu0
      %v812 = vadd.f32 0.0, %v811
      %v813 = vpop.f32.mrb[0].mxu0
      %814 = vdwg.mxu0
      %v815 = vadd.f32 %v742, %v812
      %816 = vst.msk [vmem:[%s315] sm:$0xff] %vm740, %v815
      %p817 = scmp.lt.s32.totalorder %s23, 1
      %s818 = scalar_select %p817, %s23, 1
      %s819 = smul.addr %s818, 8
      %s820 = scalar_lea.vmem %s6, %s819
      %p821 = scmp.lt.s32.totalorder %s23, 1
      %s822 = scalar_select %p821, %s23, 1
      %s823 = smul.addr %s822, 8
      %s824 = scalar_lea.vmem %s7, %s823
      // Predicated region
      $region49: #{seqbottle_forward.4} parent=43 // pred_check
        %p825 = pneg %p182
      $region50: #{seqbottle_forward.4} parent=43 // pred_check_branch
        %827 = sbr.rel (%p825) target = $region52
      $region51: #{seqbottle_forward.4} parent=43 // pred_region
        _
      $region52: #{seqbottle_forward.4} parent=43 // pred_fallthru
        _
      // Predicated region
      $region53: #{seqbottle_forward.4} parent=43 // pred_check
        %p828 = pneg %p208
      $region54: #{seqbottle_forward.4} parent=43 // pred_check_branch
        %830 = sbr.rel (%p828) target = $region56
      $region55: #{seqbottle_forward.4} parent=43 // pred_region
        _
      $region56: #{seqbottle_forward.4} parent=43 // pred_fallthru
        _
    $region44: #{seqbottle_forward.4} parent=5 // pred_fallthru
      _
    %p831 = scmp.le.s32.totalorder 2, %s14
    // Predicated region
    $region57: #{seqbottle_forward.4} parent=5 // pred_check
      %p832 = pneg %p831
    $region58: #{seqbottle_forward.4} parent=5 // pred_check_branch
      %834 = sbr.rel (%p832) target = $region60
    $region59: #{seqbottle_forward.4} parent=5 // pred_region
      %s835 = ssub.s32 %s14, 2
      // Predicated region
      $region61: #{seqbottle_forward.4} parent=59 // pred_check
        %p836 = pneg %p188
      $region62: #{seqbottle_forward.4} parent=59 // pred_check_branch
        %838 = sbr.rel (%p836) target = $region64
      $region63: #{seqbottle_forward.4} parent=59 // pred_region
        %p839 = scmp.lt.s32.totalorder %s25, 1
        %s840 = scalar_select %p839, %s25, 1
        %s841 = smul.addr %s840, 8
        %s842 = scalar_lea.vmem %s6, %s841
      $region64: #{seqbottle_forward.4} parent=59 // pred_fallthru
        _
      // Predicated region
      $region65: #{seqbottle_forward.4} parent=59 // pred_check
        %p843 = pneg %p214
      $region66: #{seqbottle_forward.4} parent=59 // pred_check_branch
        %845 = sbr.rel (%p843) target = $region68
      $region67: #{seqbottle_forward.4} parent=59 // pred_region
        %p846 = scmp.lt.s32.totalorder %s25, 1
        %s847 = scalar_select %p846, %s25, 1
        %s848 = smul.addr %s847, 8
        %s849 = scalar_lea.vmem %s7, %s848
      $region68: #{seqbottle_forward.4} parent=59 // pred_fallthru
        _
    $region60: #{seqbottle_forward.4} parent=5 // pred_fallthru
      _
  $region6: #{seqbottle_forward.4} parent=0 // loop_footer
    %s18 = sadd.s32 1, %s14
  $region7: #{seqbottle_forward.4} parent=0 // loop_footer_branch
    %13 = sbr.rel target = $region3
  $region8: #{seqbottle_forward.4} parent=0 // loop_exit
    _

</llo_original>
